<compile_context>
chip_gen: v6e
topology: v6e:2x2x1
jax: 0.10.0
libtpu: 0.0.40
codegen_flags: <defaults>
</compile_context>

<pallas_src>
import functools

import jax
import jax.numpy as jnp
from jax import lax
from jax.experimental import pallas as pl
from jax.experimental.pallas import tpu as pltpu


def _round_up(x, m):
    return ((x + m - 1) // m) * m


# --------------------------------------------------------------------------
# Stage 1: per-head projection + per-node attention scalars
# --------------------------------------------------------------------------

def _gat_project_kernel(x_ref, w_ref, a_src_ref, a_dst_ref,
                        h_ref, e_src_t_ref, e_dst_ref, *, nheads):
    """h_k = x @ W_k ; e_dst_k = h_k a_dst_k (column) ; e_src_k = a_src_k h_k^T (row)."""
    xb = x_ref[...]                                                    # (TM, Fin) bf16
    for k in range(nheads):                                            # static unroll
        hk = jnp.dot(xb, w_ref[k], preferred_element_type=jnp.float32)
        hkb = hk.astype(jnp.bfloat16)
        h_ref[k] = hkb                                                 # (TM, nhid) bf16
        e_dst_ref[k] = jnp.dot(hkb, a_dst_ref[k],
                               preferred_element_type=jnp.float32)     # (TM, 1)
        # NT contraction -> e_src already in row (lane-major) form: (1, TM)
        e_src_t_ref[k] = lax.dot_general(
            a_src_ref[k], hkb, (((1,), (1,)), ((), ())),
            preferred_element_type=jnp.float32)


# --------------------------------------------------------------------------
# Stage 2: masked online-softmax attention + aggregation (row x col tiled)
# --------------------------------------------------------------------------

def _gat_attend_kernel(adj_ref, e_dst_ref, e_src_t_ref, h_ref, bias_ref, out_ref,
                       m_sc, l_sc, acc_sc, *, nheads):
    j = pl.program_id(1)

    @pl.when(j == 0)
    def _():
        m_sc[...] = jnp.full(m_sc.shape, -1e30, jnp.float32)
        l_sc[...] = jnp.zeros(l_sc.shape, jnp.float32)
        acc_sc[...] = jnp.zeros(acc_sc.shape, jnp.float32)

    mask = adj_ref[...] > 0                                            # (TM, TC) bool
    for k in range(nheads):                                            # static unroll
        # logits[i, j] = e_dst[i] + e_src[j]   (i = destination row, j = source col)
        logits = e_dst_ref[k] + e_src_t_ref[k]                         # (TM,1)+(1,TC)
        logits = jnp.maximum(logits, 0.2 * logits)                     # LeakyReLU(0.2)
        masked = jnp.where(mask, logits, -1e30)
        m_new = jnp.maximum(m_sc[k], jnp.max(masked, axis=1, keepdims=True))
        scale = jnp.exp(m_sc[k] - m_new)                               # (TM, 1)
        p = jnp.exp(masked - m_new)                                    # non-edges -> 0
        l_sc[k] = scale * l_sc[k] + jnp.sum(p, axis=1, keepdims=True)
        acc_sc[k] = scale * acc_sc[k] + jnp.dot(
            p.astype(jnp.bfloat16), h_ref[k], preferred_element_type=jnp.float32)
        m_sc[k] = m_new

    @pl.when(j == pl.num_programs(1) - 1)
    def _():
        for k in range(nheads):
            out_ref[k] = (acc_sc[k] * pl.reciprocal(l_sc[k], approx=True)
                          + bias_ref[k]).astype(out_ref.dtype)


# --------------------------------------------------------------------------
# Layer wrapper (all heads of one GAT "stage" fused into two pallas_calls)
# --------------------------------------------------------------------------

def gat_multihead(x, adj, w3, a_src, a_dst, bias3, *, row_tile, col_tile, out_dtype):
    """Fused multi-head GATConv layer.

    x: (Np, Fin) bf16, adj: (Np, Np) int8, w3: (H, Fin, nhid) bf16,
    a_src: (H, 1, nhid) bf16, a_dst: (H, nhid, 1) bf16, bias3: (H, 1, nhid) f32.
    Returns (H, Np, nhid) in out_dtype.
    """
    n_pad, f_in = x.shape
    nheads, _, nhid = w3.shape
    assert n_pad % row_tile == 0 and row_tile % 128 == 0
    assert n_pad % col_tile == 0 and col_tile % 128 == 0
    n_row, n_col = n_pad // row_tile, n_pad // col_tile
    vmem_limit = 64 * 1024 * 1024
    invariant = dict(pipeline_mode=pl.Buffered(1))   # single-buffer constant-index operands

    # ---- stage 1: projection + attention scalars (one pass over x) -------------
    h, e_src_t, e_dst = pl.pallas_call(
        functools.partial(_gat_project_kernel, nheads=nheads),
        out_shape=(jax.ShapeDtypeStruct((nheads, n_pad, nhid), jnp.bfloat16),
                   jax.ShapeDtypeStruct((nheads, 1, n_pad), jnp.float32),
                   jax.ShapeDtypeStruct((nheads, n_pad, 1), jnp.float32)),
        grid=(n_row,),
        in_specs=[
            pl.BlockSpec((row_tile, f_in), lambda i: (i, 0)),
            pl.BlockSpec((nheads, f_in, nhid), lambda i: (0, 0, 0), **invariant),
            pl.BlockSpec((nheads, 1, nhid), lambda i: (0, 0, 0), **invariant),
            pl.BlockSpec((nheads, nhid, 1), lambda i: (0, 0, 0), **invariant),
        ],
        out_specs=(pl.BlockSpec((nheads, row_tile, nhid), lambda i: (0, i, 0)),
                   pl.BlockSpec((nheads, 1, row_tile), lambda i: (0, 0, i)),
                   pl.BlockSpec((nheads, row_tile, 1), lambda i: (0, i, 0))),
        compiler_params=pltpu.CompilerParams(
            dimension_semantics=("parallel",), vmem_limit_bytes=vmem_limit),
    )(x, w3, a_src, a_dst)

    # ---- stage 2: online-softmax attention over (row tile, source-col tile) grid ----
    out = pl.pallas_call(
        functools.partial(_gat_attend_kernel, nheads=nheads),
        out_shape=jax.ShapeDtypeStruct((nheads, n_pad, nhid), out_dtype),
        grid=(n_row, n_col),
        in_specs=[
            pl.BlockSpec((row_tile, col_tile), lambda i, j: (i, j)),            # adj int8
            pl.BlockSpec((nheads, row_tile, 1), lambda i, j: (0, i, 0)),        # e_dst
            pl.BlockSpec((nheads, 1, col_tile), lambda i, j: (0, 0, j)),        # e_src^T
            pl.BlockSpec((nheads, col_tile, nhid), lambda i, j: (0, j, 0)),     # h sources
            pl.BlockSpec((nheads, 1, nhid), lambda i, j: (0, 0, 0), **invariant),  # bias
        ],
        out_specs=pl.BlockSpec((nheads, row_tile, nhid), lambda i, j: (0, i, 0)),
        scratch_shapes=[pltpu.VMEM((nheads, row_tile, 1), jnp.float32),     # m
                        pltpu.VMEM((nheads, row_tile, 1), jnp.float32),     # l
                        pltpu.VMEM((nheads, row_tile, nhid), jnp.float32)],  # acc
        compiler_params=pltpu.CompilerParams(
            dimension_semantics=("parallel", "arbitrary"),
            vmem_limit_bytes=vmem_limit),
    )(adj, e_dst, e_src_t, h, bias3)
    return out


# --------------------------------------------------------------------------
# Encoder: fused multi-head layer -> output GAT layer
# --------------------------------------------------------------------------

def _pack_heads(params_list):
    """Stack per-head (W, a_src, a_dst, bias) into lane-aligned 3-D fused parameters."""
    nhid = params_list[0][0].shape[1]
    w3 = jnp.stack([p[0] for p in params_list]).astype(jnp.bfloat16)               # (H,Fin,nhid)
    a_src = jnp.stack([p[1].reshape(1, nhid) for p in params_list]).astype(jnp.bfloat16)
    a_dst = jnp.stack([p[2].reshape(nhid, 1) for p in params_list]).astype(jnp.bfloat16)
    bias = jnp.stack([p[3].reshape(1, nhid) for p in params_list]).astype(jnp.float32)
    return w3, a_src, a_dst, bias


def gat_encoder(atom_features, adj, attention_params, out_att_params,
                row_tile=None, col_tile=None):
    """GATEncoder.forward: multi-head GAT layer (concat) -> output GAT layer."""
    n = atom_features.shape[0]
    nheads = len(attention_params)
    nhid = attention_params[0][0].shape[1]

    # Tiling: row/col tiles are multiples of 128 (lane-aligned e_src^T write, int8
    # adj sublane packing, unmasked stores, v5e 128-wide MXU M-tile).  Keep >= 2 row
    # tiles so both v7x TensorCores get work; column tiling bounds VMEM vs N.
    if row_tile is None:
        row_tile = 256 if n > 512 else 128
    row_tile = max(128, (row_tile // 128) * 128)
    n_pad = _round_up(n, row_tile)
    if n_pad // row_tile < 2:
        n_pad = 2 * row_tile
    if col_tile is None:
        col_tile = 2048
    col_tile = max(128, (col_tile // 128) * 128)
    col_tile = min(col_tile, n_pad)
    while n_pad % col_tile:
        col_tile -= 128

    # bf16 node features, int8 {0,1} adjacency (halves the dominant N^2 HBM stream).
    x = jnp.zeros((n_pad, atom_features.shape[1]), jnp.bfloat16)
    x = x.at[:n].set(atom_features.astype(jnp.bfloat16))
    adj_p = jnp.zeros((n_pad, n_pad), jnp.int8).at[:n, :n].set((adj > 0).astype(jnp.int8))

    # Layer 1: all heads fused; inter-stage output kept in bf16.
    w1, a1s, a1d, b1 = _pack_heads(attention_params)
    h1 = gat_multihead(x, adj_p, w1, a1s, a1d, b1,
                       row_tile=row_tile, col_tile=col_tile, out_dtype=jnp.bfloat16)
    # Concat heads along features (tiny XLA glue; negligible next to the N^2 adj stream).
    h1_cat = jnp.transpose(h1, (1, 0, 2)).reshape(n_pad, nheads * nhid)

    # Layer 2: single-head output GAT, f32 output.
    w2, a2s, a2d, b2 = _pack_heads([out_att_params])
    out = gat_multihead(h1_cat, adj_p, w2, a2s, a2d, b2,
                        row_tile=row_tile, col_tile=col_tile, out_dtype=jnp.float32)
    return out[0, :n]


# --------------------------------------------------------------------------
# Glue / parameters / reference
# --------------------------------------------------------------------------

def make_gat_params(key, f_in, f_out):
    k1, k2, k3 = jax.random.split(key, 3)
    w = jax.random.normal(k1, (f_in, f_out), jnp.float32) / jnp.sqrt(jnp.float32(f_in))
    a_src = jax.random.normal(k2, (1, f_out), jnp.float32) * 0.1
    a_dst = jax.random.normal(k3, (1, f_out), jnp.float32) * 0.1
    bias = jnp.zeros((1, f_out), jnp.float32)
    return (w, a_src, a_dst, bias)


def edge_index_to_adj(edge_index, n):
    """adj[dst, src] = 1 for each edge src->dst, plus self loops (PyG default)."""
    src, dst = edge_index[0], edge_index[1]
    adj = jnp.zeros((n, n), jnp.float32).at[dst, src].set(1.0)
    return jnp.maximum(adj, jnp.eye(n, dtype=jnp.float32))


def gat_layer_ref(x, adj, params, mimic_bf16=False):
    """Pure-JAX reference; mimic_bf16=True reproduces the kernel's bf16 matmul precision."""
    w, a_src, a_dst, bias = params
    if mimic_bf16:
        h = jnp.dot(x.astype(jnp.bfloat16), w.astype(jnp.bfloat16),
                    preferred_element_type=jnp.float32)
        hb = h.astype(jnp.bfloat16)
        e_src = jnp.dot(hb, a_src.astype(jnp.bfloat16).T, preferred_element_type=jnp.float32)
        e_dst = jnp.dot(hb, a_dst.astype(jnp.bfloat16).T, preferred_element_type=jnp.float32)
        h_agg = hb
    else:
        h = x @ w
        e_src = jnp.sum(h * a_src, axis=1, keepdims=True)
        e_dst = jnp.sum(h * a_dst, axis=1, keepdims=True)
        h_agg = h
    logits = e_dst + e_src.T
    logits = jnp.maximum(logits, 0.2 * logits)
    masked = jnp.where(adj > 0, logits, -1e30)
    p = jnp.exp(masked - jnp.max(masked, axis=1, keepdims=True))
    alpha = p / jnp.sum(p, axis=1, keepdims=True)
    if mimic_bf16:
        return jnp.dot(alpha.astype(jnp.bfloat16), h_agg,
                       preferred_element_type=jnp.float32) + bias
    return alpha @ h_agg + bias


def gat_encoder_ref(x, adj, attention_params, out_att_params, mimic_bf16=False):
    h = jnp.concatenate(
        [gat_layer_ref(x, adj, p, mimic_bf16) for p in attention_params], axis=1)
    if mimic_bf16:
        h = h.astype(jnp.bfloat16).astype(jnp.float32)   # kernel stores h1 in bf16
    return gat_layer_ref(h, adj, out_att_params, mimic_bf16)


# --------------------------------------------------------------------------

if __name__ == "__main__":
    # Small deterministic problem: N nodes, nfeat -> nhid per head, nheads heads, out_features.
    N, NFEAT, NHID, NHEADS, OUT_FEATURES = 16, 16, 32, 2, 8
    E = 32

    key = jax.random.PRNGKey(0)
    k_x, k_e, k_p = jax.random.split(key, 3)

    atom_features = jax.random.normal(k_x, (N, NFEAT), jnp.float32)
    edge_index = jax.random.randint(k_e, (2, E), 0, N, dtype=jnp.int32)
    adj = edge_index_to_adj(edge_index, N)

    head_keys = jax.random.split(k_p, NHEADS + 1)
    attention_params = [make_gat_params(head_keys[i], NFEAT, NHID) for i in range(NHEADS)]
    out_att_params = make_gat_params(head_keys[NHEADS], NHID * NHEADS, OUT_FEATURES)

    # row_tile=col_tile=128 with n_pad=256 exercises a 2x2 stage-2 grid, i.e. a real
    # multi-step online-softmax column axis and both destination-row tiles.
    out = gat_encoder(atom_features, adj, attention_params, out_att_params,
                      row_tile=128, col_tile=128)
    out = jax.block_until_ready(out)

    assert out.shape == (N, OUT_FEATURES)
    # Tight check vs. a reference with matching bf16 matmul / bf16 inter-stage precision.
    ref_bf16 = gat_encoder_ref(atom_features, adj, attention_params, out_att_params, True)
    assert jnp.allclose(out, ref_bf16, atol=2e-2, rtol=2e-2)
    # Loose check vs. the full-f32 reference (original module semantics).
    ref_f32 = gat_encoder_ref(atom_features, adj, attention_params, out_att_params, False)
    assert jnp.allclose(out, ref_f32, atol=2e-1, rtol=1e-1)

    print("KERNEL_OK")
</pallas_src>

<mosaic_0001>
module attributes {stable_mosaic.version = 11 : i64} {
  func.func @_gat_project_kernel(%arg0: i32, %arg1: memref<128x16xbf16, #tpu.memory_space<vmem>>, %arg2: memref<2x16x32xbf16, #tpu.memory_space<vmem>>, %arg3: memref<2x1x32xbf16, #tpu.memory_space<vmem>>, %arg4: memref<2x32x1xbf16, #tpu.memory_space<vmem>>, %arg5: memref<2x128x32xbf16, #tpu.memory_space<vmem>>, %arg6: memref<2x1x128xf32, #tpu.memory_space<vmem>>, %arg7: memref<2x128x1xf32, #tpu.memory_space<vmem>>) attributes {dimension_semantics = [#tpu.dimension_semantics<parallel>], iteration_bounds = array<i64: 2>, scalar_prefetch = 0 : i64, scratch_operands = 0 : i64, tpu.core_type = #tpu.core_type<tc>, window_params = [{transform_indices = @transform_0, window_bounds = array<i64: 128, 16>}, {pipeline_mode = #tpu.pipeline_mode<synchronous>, transform_indices = @transform_1, window_bounds = array<i64: 2, 16, 32>}, {pipeline_mode = #tpu.pipeline_mode<synchronous>, transform_indices = @transform_2, window_bounds = array<i64: 2, 1, 32>}, {pipeline_mode = #tpu.pipeline_mode<synchronous>, transform_indices = @transform_3, window_bounds = array<i64: 2, 32, 1>}, {transform_indices = @transform_4, window_bounds = array<i64: 2, 128, 32>}, {transform_indices = @transform_5, window_bounds = array<i64: 2, 1, 128>}, {transform_indices = @transform_6, window_bounds = array<i64: 2, 128, 1>}]} {
    %c0 = arith.constant 0 : index
    %c0_0 = arith.constant 0 : index
    %0 = vector.load %arg1[%c0, %c0_0] : memref<128x16xbf16, #tpu.memory_space<vmem>>, vector<128x16xbf16>
    %c0_1 = arith.constant 0 : index
    %c0_2 = arith.constant 0 : index
    %c0_3 = arith.constant 0 : index
    %1 = vector.load %arg2[%c0_1, %c0_2, %c0_3] : memref<2x16x32xbf16, #tpu.memory_space<vmem>>, vector<1x16x32xbf16>
    %2 = vector.shape_cast %1 : vector<1x16x32xbf16> to vector<16x32xbf16>
    %cst = arith.constant dense<0.000000e+00> : vector<128x32xf32>
    %3 = tpu.matmul %0, %2, %cst {dimension_numbers = #tpu.dot_dimension_numbers<[1], [0], [0], [1], [0, 0, 1, 1], [], []>} : vector<128x16xbf16>, vector<16x32xbf16>, vector<128x32xf32> -> vector<128x32xf32>
    %4 = arith.truncf %3 : vector<128x32xf32> to vector<128x32xbf16>
    %c0_4 = arith.constant 0 : index
    %c0_5 = arith.constant 0 : index
    %c0_6 = arith.constant 0 : index
    %5 = vector.load %arg5[%c0_4, %c0_5, %c0_6] : memref<2x128x32xbf16, #tpu.memory_space<vmem>>, vector<1x128x32xbf16>
    %6 = vector.shape_cast %5 : vector<1x128x32xbf16> to vector<128x32xbf16>
    %7 = vector.shape_cast %4 : vector<128x32xbf16> to vector<1x128x32xbf16>
    tpu.vector_store %arg5[%c0_4, %c0_5, %c0_6], %7 {strides = array<i32>} : memref<2x128x32xbf16, #tpu.memory_space<vmem>>, vector<1x128x32xbf16>,
    %c0_7 = arith.constant 0 : index
    %c0_8 = arith.constant 0 : index
    %c0_9 = arith.constant 0 : index
    %8 = vector.load %arg4[%c0_7, %c0_8, %c0_9] : memref<2x32x1xbf16, #tpu.memory_space<vmem>>, vector<1x32x1xbf16>
    %9 = vector.shape_cast %8 : vector<1x32x1xbf16> to vector<32x1xbf16>
    %cst_10 = arith.constant dense<0.000000e+00> : vector<128x1xf32>
    %10 = tpu.matmul %4, %9, %cst_10 {dimension_numbers = #tpu.dot_dimension_numbers<[1], [0], [0], [1], [0, 0, 1, 1], [], []>} : vector<128x32xbf16>, vector<32x1xbf16>, vector<128x1xf32> -> vector<128x1xf32>
    %c0_11 = arith.constant 0 : index
    %c0_12 = arith.constant 0 : index
    %c0_13 = arith.constant 0 : index
    %11 = vector.load %arg7[%c0_11, %c0_12, %c0_13] : memref<2x128x1xf32, #tpu.memory_space<vmem>>, vector<1x128x1xf32>
    %12 = vector.shape_cast %11 : vector<1x128x1xf32> to vector<128x1xf32>
    %13 = vector.shape_cast %10 : vector<128x1xf32> to vector<1x128x1xf32>
    tpu.vector_store %arg7[%c0_11, %c0_12, %c0_13], %13 {strides = array<i32>} : memref<2x128x1xf32, #tpu.memory_space<vmem>>, vector<1x128x1xf32>,
    %c0_14 = arith.constant 0 : index
    %c0_15 = arith.constant 0 : index
    %c0_16 = arith.constant 0 : index
    %14 = vector.load %arg3[%c0_14, %c0_15, %c0_16] : memref<2x1x32xbf16, #tpu.memory_space<vmem>>, vector<1x1x32xbf16>
    %15 = vector.shape_cast %14 : vector<1x1x32xbf16> to vector<1x32xbf16>
    %cst_17 = arith.constant dense<0.000000e+00> : vector<1x128xf32>
    %16 = tpu.matmul %15, %4, %cst_17 {dimension_numbers = #tpu.dot_dimension_numbers<[1], [1], [0], [0], [0, 0, 1, 0], [], []>} : vector<1x32xbf16>, vector<128x32xbf16>, vector<1x128xf32> -> vector<1x128xf32>
    %c0_18 = arith.constant 0 : index
    %c0_19 = arith.constant 0 : index
    %c0_20 = arith.constant 0 : index
    %17 = vector.load %arg6[%c0_18, %c0_19, %c0_20] : memref<2x1x128xf32, #tpu.memory_space<vmem>>, vector<1x1x128xf32>
    %18 = vector.shape_cast %17 : vector<1x1x128xf32> to vector<1x128xf32>
    %19 = vector.shape_cast %16 : vector<1x128xf32> to vector<1x1x128xf32>
    tpu.vector_store %arg6[%c0_18, %c0_19, %c0_20], %19 {strides = array<i32>} : memref<2x1x128xf32, #tpu.memory_space<vmem>>, vector<1x1x128xf32>,
    %c1 = arith.constant 1 : index
    %c0_21 = arith.constant 0 : index
    %c0_22 = arith.constant 0 : index
    %20 = vector.load %arg2[%c1, %c0_21, %c0_22] : memref<2x16x32xbf16, #tpu.memory_space<vmem>>, vector<1x16x32xbf16>
    %21 = vector.shape_cast %20 : vector<1x16x32xbf16> to vector<16x32xbf16>
    %cst_23 = arith.constant dense<0.000000e+00> : vector<128x32xf32>
    %22 = tpu.matmul %0, %21, %cst_23 {dimension_numbers = #tpu.dot_dimension_numbers<[1], [0], [0], [1], [0, 0, 1, 1], [], []>} : vector<128x16xbf16>, vector<16x32xbf16>, vector<128x32xf32> -> vector<128x32xf32>
    %23 = arith.truncf %22 : vector<128x32xf32> to vector<128x32xbf16>
    %c1_24 = arith.constant 1 : index
    %c0_25 = arith.constant 0 : index
    %c0_26 = arith.constant 0 : index
    %24 = vector.load %arg5[%c1_24, %c0_25, %c0_26] : memref<2x128x32xbf16, #tpu.memory_space<vmem>>, vector<1x128x32xbf16>
    %25 = vector.shape_cast %24 : vector<1x128x32xbf16> to vector<128x32xbf16>
    %26 = vector.shape_cast %23 : vector<128x32xbf16> to vector<1x128x32xbf16>
    tpu.vector_store %arg5[%c1_24, %c0_25, %c0_26], %26 {strides = array<i32>} : memref<2x128x32xbf16, #tpu.memory_space<vmem>>, vector<1x128x32xbf16>,
    %c1_27 = arith.constant 1 : index
    %c0_28 = arith.constant 0 : index
    %c0_29 = arith.constant 0 : index
    %27 = vector.load %arg4[%c1_27, %c0_28, %c0_29] : memref<2x32x1xbf16, #tpu.memory_space<vmem>>, vector<1x32x1xbf16>
    %28 = vector.shape_cast %27 : vector<1x32x1xbf16> to vector<32x1xbf16>
    %cst_30 = arith.constant dense<0.000000e+00> : vector<128x1xf32>
    %29 = tpu.matmul %23, %28, %cst_30 {dimension_numbers = #tpu.dot_dimension_numbers<[1], [0], [0], [1], [0, 0, 1, 1], [], []>} : vector<128x32xbf16>, vector<32x1xbf16>, vector<128x1xf32> -> vector<128x1xf32>
    %c1_31 = arith.constant 1 : index
    %c0_32 = arith.constant 0 : index
    %c0_33 = arith.constant 0 : index
    %30 = vector.load %arg7[%c1_31, %c0_32, %c0_33] : memref<2x128x1xf32, #tpu.memory_space<vmem>>, vector<1x128x1xf32>
    %31 = vector.shape_cast %30 : vector<1x128x1xf32> to vector<128x1xf32>
    %32 = vector.shape_cast %29 : vector<128x1xf32> to vector<1x128x1xf32>
    tpu.vector_store %arg7[%c1_31, %c0_32, %c0_33], %32 {strides = array<i32>} : memref<2x128x1xf32, #tpu.memory_space<vmem>>, vector<1x128x1xf32>,
    %c1_34 = arith.constant 1 : index
    %c0_35 = arith.constant 0 : index
    %c0_36 = arith.constant 0 : index
    %33 = vector.load %arg3[%c1_34, %c0_35, %c0_36] : memref<2x1x32xbf16, #tpu.memory_space<vmem>>, vector<1x1x32xbf16>
    %34 = vector.shape_cast %33 : vector<1x1x32xbf16> to vector<1x32xbf16>
    %cst_37 = arith.constant dense<0.000000e+00> : vector<1x128xf32>
    %35 = tpu.matmul %34, %23, %cst_37 {dimension_numbers = #tpu.dot_dimension_numbers<[1], [1], [0], [0], [0, 0, 1, 0], [], []>} : vector<1x32xbf16>, vector<128x32xbf16>, vector<1x128xf32> -> vector<1x128xf32>
    %c1_38 = arith.constant 1 : index
    %c0_39 = arith.constant 0 : index
    %c0_40 = arith.constant 0 : index
    %36 = vector.load %arg6[%c1_38, %c0_39, %c0_40] : memref<2x1x128xf32, #tpu.memory_space<vmem>>, vector<1x1x128xf32>
    %37 = vector.shape_cast %36 : vector<1x1x128xf32> to vector<1x128xf32>
    %38 = vector.shape_cast %35 : vector<1x128xf32> to vector<1x1x128xf32>
    tpu.vector_store %arg6[%c1_38, %c0_39, %c0_40], %38 {strides = array<i32>} : memref<2x1x128xf32, #tpu.memory_space<vmem>>, vector<1x1x128xf32>,
    return
  }
  func.func @transform_0(%arg0: i32) -> (i32, i32) {
    %c0_i32 = arith.constant 0 : i32
    %c0_i32_0 = arith.constant 0 : i32
    return %arg0, %c0_i32 : i32, i32
  }
  func.func @transform_1(%arg0: i32) -> (i32, i32, i32) {
    %c0_i32 = arith.constant 0 : i32
    %c0_i32_0 = arith.constant 0 : i32
    %c0_i32_1 = arith.constant 0 : i32
    %c0_i32_2 = arith.constant 0 : i32
    return %c0_i32, %c0_i32_0, %c0_i32_1 : i32, i32, i32
  }
  func.func @transform_2(%arg0: i32) -> (i32, i32, i32) {
    %c0_i32 = arith.constant 0 : i32
    %c0_i32_0 = arith.constant 0 : i32
    %c0_i32_1 = arith.constant 0 : i32
    %c0_i32_2 = arith.constant 0 : i32
    return %c0_i32, %c0_i32_0, %c0_i32_1 : i32, i32, i32
  }
  func.func @transform_3(%arg0: i32) -> (i32, i32, i32) {
    %c0_i32 = arith.constant 0 : i32
    %c0_i32_0 = arith.constant 0 : i32
    %c0_i32_1 = arith.constant 0 : i32
    %c0_i32_2 = arith.constant 0 : i32
    return %c0_i32, %c0_i32_0, %c0_i32_1 : i32, i32, i32
  }
  func.func @transform_4(%arg0: i32) -> (i32, i32, i32) {
    %c0_i32 = arith.constant 0 : i32
    %c0_i32_0 = arith.constant 0 : i32
    %c0_i32_1 = arith.constant 0 : i32
    return %c0_i32, %arg0, %c0_i32_0 : i32, i32, i32
  }
  func.func @transform_5(%arg0: i32) -> (i32, i32, i32) {
    %c0_i32 = arith.constant 0 : i32
    %c0_i32_0 = arith.constant 0 : i32
    %c0_i32_1 = arith.constant 0 : i32
    return %c0_i32, %c0_i32_0, %arg0 : i32, i32, i32
  }
  func.func @transform_6(%arg0: i32) -> (i32, i32, i32) {
    %c0_i32 = arith.constant 0 : i32
    %c0_i32_0 = arith.constant 0 : i32
    %c0_i32_1 = arith.constant 0 : i32
    return %c0_i32, %arg0, %c0_i32_0 : i32, i32, i32
  }
}

</mosaic_0001>

<llo_original>
// kernel: tpu_custom_call.1
$region0: #{tpu_custom_call.1}
  #allocation0 [shape = 'u32[]', space=smem, size = 0x4, offset = 0x4, fixed_abs, tag = 'smem constant byte address 0x4 - core index']
  #allocation1 [shape = 'u32[144,128]{1,0:T(1,128)}', space=vmem, size = 0x12000, scoped, tag = 'internal scratch']
  %s0 = inlined_call_operand.vmem [shape: bf16[256,16], index: 0, kind: input, shape index: {}]
  %s1 = inlined_call_operand.vmem [shape: bf16[2,16,32], index: 1, kind: input, shape index: {}]
  %s2 = inlined_call_operand.vmem [shape: bf16[2,1,32], index: 2, kind: input, shape index: {}]
  %s3 = inlined_call_operand.vmem [shape: bf16[2,32,1], index: 3, kind: input, shape index: {}]
  %s4 = inlined_call_operand.vmem [shape: bf16[2,256,32], index: 4, kind: output, shape index: {0}]
  %s5 = inlined_call_operand.hbm [shape: f32[2,1,256], index: 5, kind: output, shape index: {1}]
  %s6 = inlined_call_operand.vmem [shape: f32[2,256,1], index: 6, kind: output, shape index: {2}]
  %7 = xla_tuple %s4, %s5, %s6
  %s8 = sld [smem:[#allocation0]]
  $region136: #{tpu_custom_call.1} parent=0
    _
  %s10 = ssub.s32 1, %s8
  %s11 = scalar_select 0, %s10, %s8
  $region1: #{tpu_custom_call.1} parent=0
    #allocation2 [shape = 'u8[131072]{0}', space=vmem, size = 0x20000, scoped, tag = 'output window, operand 0']
    #allocation3 [shape = 'u8[2048]{0}', space=vmem, size = 0x800, scoped, tag = 'output window, operand 1']
    #allocation4 [shape = 's32[2]{0}', space=sflag, size = 0x8, scoped, tag = 'scoped memory for tpu_custom_call.1']
    #allocation5 [shape = 'u8[262144]{0}', space=vmem, size = 0x40000, scoped, tag = 'output window, operand 2']
    %12 = vsyncpa [#allocation4], 0
    %s13 = scalar_lea.sflag [#allocation4], 1
    %14 = vsyncpa %s13, 0
    loop: start=0, step=1, limit=4
    $region2: #{tpu_custom_call.1} parent=1 // loop_pre_header
      _
    $region3: #{tpu_custom_call.1} parent=1 // loop_header
      %s16 = sphi 0, %s20
      %p17 = scmp.ge.s32.totalorder %s16, 4
      %s26 = sphi 0, %s28
      %s29 = sphi 0, %s26
      %s30 = sphi 0, %s29
      %s46 = sphi 0, %s30
      %s50 = sphi 0, %s50
      %s52 = sphi 0, %s50
      %s53 = sphi 0, %s52
      %s67 = sphi 0, %s53
      %s71 = sphi 0, %s71
      %s73 = sphi 0, %s71
      %s74 = sphi 0, %s73
      %s88 = sphi 0, %s74
      %s92 = sphi 0, %s92
      %s94 = sphi 0, %s92
      %s95 = sphi 0, %s94
      %s109 = sphi 0, %s95
      %s115 = sphi 0, %s117
      %s118 = sphi 0, %s115
      %s119 = sphi 0, %s118
      %s135 = sphi 0, %s119
      %s141 = sphi 0, %s143
      %s144 = sphi 0, %s141
      %s145 = sphi 0, %s144
      %s161 = sphi 0, %s145
      %s167 = sphi 0, %s169
      %s170 = sphi 0, %s167
      %s171 = sphi 0, %s170
      %s187 = sphi 0, %s171
    $region4: #{tpu_custom_call.1} parent=1 // loop_header_branch
      %19 = sbr.rel (%p17) target = $region8
    $region5: #{tpu_custom_call.1} parent=1 // loop_body
      %s21 = ssub.s32 %s16, 1
      %s22 = ssub.s32 %s16, 2
      %s23 = sadd.s32 %s16, 1
      %s24 = ssub.s32 %s16, %s23
      %p25 = scmp.eq.s32.totalorder %s24, 0
      %s27 = sadd.s32 %s26, 1
      %s28 = scalar_select %p25, %s26, %s27
      %p31 = pneg %p25
      %p32 = scmp.eq.s32.totalorder %s16, 1
      %p33 = por %p31, %p32
      %p34 = scmp.ne.s32.totalorder %s26, %s29
      %p35 = scmp.eq.s32.totalorder %s16, 0
      %p36 = por %p34, %p35
      %p37 = scmp.ne.s32.totalorder %s26, %s29
      %p38 = scmp.eq.s32.totalorder %s21, 1
      %p39 = por %p37, %p38
      %p40 = scmp.ne.s32.totalorder %s29, %s30
      %p41 = scmp.eq.s32.totalorder %s21, 0
      %p42 = por %p40, %p41
      %p43 = scmp.ne.s32.totalorder %s29, %s30
      %p44 = scmp.eq.s32.totalorder %s22, 1
      %p45 = por %p43, %p44
      %p47 = scmp.ne.s32.totalorder %s30, %s46
      %p48 = scmp.eq.s32.totalorder %s22, 0
      %p49 = por %p47, %p48
      %s51 = sadd.s32 %s50, 1
      %p54 = scmp.eq.s32.totalorder %s16, 1
      %p55 = scmp.ne.s32.totalorder %s50, %s52
      %p56 = scmp.eq.s32.totalorder %s16, 0
      %p57 = por %p55, %p56
      %p58 = scmp.ne.s32.totalorder %s50, %s52
      %p59 = scmp.eq.s32.totalorder %s21, 1
      %p60 = por %p58, %p59
      %p61 = scmp.ne.s32.totalorder %s52, %s53
      %p62 = scmp.eq.s32.totalorder %s21, 0
      %p63 = por %p61, %p62
      %p64 = scmp.ne.s32.totalorder %s52, %s53
      %p65 = scmp.eq.s32.totalorder %s22, 1
      %p66 = por %p64, %p65
      %p68 = scmp.ne.s32.totalorder %s53, %s67
      %p69 = scmp.eq.s32.totalorder %s22, 0
      %p70 = por %p68, %p69
      %s72 = sadd.s32 %s71, 1
      %p75 = scmp.eq.s32.totalorder %s16, 1
      %p76 = scmp.ne.s32.totalorder %s71, %s73
      %p77 = scmp.eq.s32.totalorder %s16, 0
      %p78 = por %p76, %p77
      %p79 = scmp.ne.s32.totalorder %s71, %s73
      %p80 = scmp.eq.s32.totalorder %s21, 1
      %p81 = por %p79, %p80
      %p82 = scmp.ne.s32.totalorder %s73, %s74
      %p83 = scmp.eq.s32.totalorder %s21, 0
      %p84 = por %p82, %p83
      %p85 = scmp.ne.s32.totalorder %s73, %s74
      %p86 = scmp.eq.s32.totalorder %s22, 1
      %p87 = por %p85, %p86
      %p89 = scmp.ne.s32.totalorder %s74, %s88
      %p90 = scmp.eq.s32.totalorder %s22, 0
      %p91 = por %p89, %p90
      %s93 = sadd.s32 %s92, 1
      %p96 = scmp.eq.s32.totalorder %s16, 1
      %p97 = scmp.ne.s32.totalorder %s92, %s94
      %p98 = scmp.eq.s32.totalorder %s16, 0
      %p99 = por %p97, %p98
      %p100 = scmp.ne.s32.totalorder %s92, %s94
      %p101 = scmp.eq.s32.totalorder %s21, 1
      %p102 = por %p100, %p101
      %p103 = scmp.ne.s32.totalorder %s94, %s95
      %p104 = scmp.eq.s32.totalorder %s21, 0
      %p105 = por %p103, %p104
      %p106 = scmp.ne.s32.totalorder %s94, %s95
      %p107 = scmp.eq.s32.totalorder %s22, 1
      %p108 = por %p106, %p107
      %p110 = scmp.ne.s32.totalorder %s95, %s109
      %p111 = scmp.eq.s32.totalorder %s22, 0
      %p112 = por %p110, %p111
      %s113 = ssub.s32 %s16, %s23
      %p114 = scmp.eq.s32.totalorder %s113, 0
      %s116 = sadd.s32 %s115, 1
      %s117 = scalar_select %p114, %s115, %s116
      %p120 = pneg %p114
      %p121 = scmp.eq.s32.totalorder %s16, 1
      %p122 = por %p120, %p121
      %p123 = scmp.ne.s32.totalorder %s115, %s118
      %p124 = scmp.eq.s32.totalorder %s16, 0
      %p125 = por %p123, %p124
      %p126 = scmp.ne.s32.totalorder %s115, %s118
      %p127 = scmp.eq.s32.totalorder %s21, 1
      %p128 = por %p126, %p127
      %p129 = scmp.ne.s32.totalorder %s118, %s119
      %p130 = scmp.eq.s32.totalorder %s21, 0
      %p131 = por %p129, %p130
      %p132 = scmp.ne.s32.totalorder %s118, %s119
      %p133 = scmp.eq.s32.totalorder %s22, 1
      %p134 = por %p132, %p133
      %p136 = scmp.ne.s32.totalorder %s119, %s135
      %p137 = scmp.eq.s32.totalorder %s22, 0
      %p138 = por %p136, %p137
      %s139 = ssub.s32 %s16, %s23
      %p140 = scmp.eq.s32.totalorder %s139, 0
      %s142 = sadd.s32 %s141, 1
      %s143 = scalar_select %p140, %s141, %s142
      %p146 = pneg %p140
      %p147 = scmp.eq.s32.totalorder %s16, 1
      %p148 = por %p146, %p147
      %p149 = scmp.ne.s32.totalorder %s141, %s144
      %p150 = scmp.eq.s32.totalorder %s16, 0
      %p151 = por %p149, %p150
      %p152 = scmp.ne.s32.totalorder %s141, %s144
      %p153 = scmp.eq.s32.totalorder %s21, 1
      %p154 = por %p152, %p153
      %p155 = scmp.ne.s32.totalorder %s144, %s145
      %p156 = scmp.eq.s32.totalorder %s21, 0
      %p157 = por %p155, %p156
      %p158 = scmp.ne.s32.totalorder %s144, %s145
      %p159 = scmp.eq.s32.totalorder %s22, 1
      %p160 = por %p158, %p159
      %p162 = scmp.ne.s32.totalorder %s145, %s161
      %p163 = scmp.eq.s32.totalorder %s22, 0
      %p164 = por %p162, %p163
      %s165 = ssub.s32 %s16, %s23
      %p166 = scmp.eq.s32.totalorder %s165, 0
      %s168 = sadd.s32 %s167, 1
      %s169 = scalar_select %p166, %s167, %s168
      %p172 = pneg %p166
      %p173 = scmp.eq.s32.totalorder %s16, 1
      %p174 = por %p172, %p173
      %p175 = scmp.ne.s32.totalorder %s167, %s170
      %p176 = scmp.eq.s32.totalorder %s16, 0
      %p177 = por %p175, %p176
      %p178 = scmp.ne.s32.totalorder %s167, %s170
      %p179 = scmp.eq.s32.totalorder %s21, 1
      %p180 = por %p178, %p179
      %p181 = scmp.ne.s32.totalorder %s170, %s171
      %p182 = scmp.eq.s32.totalorder %s21, 0
      %p183 = por %p181, %p182
      %p184 = scmp.ne.s32.totalorder %s170, %s171
      %p185 = scmp.eq.s32.totalorder %s22, 1
      %p186 = por %p184, %p185
      %p188 = scmp.ne.s32.totalorder %s171, %s187
      %p189 = scmp.eq.s32.totalorder %s22, 0
      %p190 = por %p188, %p189
      %p191 = scmp.le.s32.totalorder 1, %s16
      %p192 = scmp.lt.s32.totalorder %s16, 3
      %p193 = pnand %p191, %p192
      %p194 = pneg %p193
      // Predicated region
      $region9: #{tpu_custom_call.1} parent=5 // pred_check
        _
      $region10: #{tpu_custom_call.1} parent=5 // pred_check_branch
        %196 = sbr.rel (%p193) target = $region12
      $region11: #{tpu_custom_call.1} parent=5 // pred_region
        %s197 = ssub.s32 %s16, 1
        // Predicated region
        $region13: #{tpu_custom_call.1} parent=11 // pred_check
          %p198 = pneg %p63
        $region14: #{tpu_custom_call.1} parent=11 // pred_check_branch
          %200 = sbr.rel (%p198) target = $region16
        $region15: #{tpu_custom_call.1} parent=11 // pred_region
          _
        $region16: #{tpu_custom_call.1} parent=11 // pred_fallthru
          _
        // Predicated region
        $region17: #{tpu_custom_call.1} parent=11 // pred_check
          %p201 = pneg %p84
        $region18: #{tpu_custom_call.1} parent=11 // pred_check_branch
          %203 = sbr.rel (%p201) target = $region20
        $region19: #{tpu_custom_call.1} parent=11 // pred_region
          _
        $region20: #{tpu_custom_call.1} parent=11 // pred_fallthru
          _
        // Predicated region
        $region21: #{tpu_custom_call.1} parent=11 // pred_check
          %p204 = pneg %p105
        $region22: #{tpu_custom_call.1} parent=11 // pred_check_branch
          %206 = sbr.rel (%p204) target = $region24
        $region23: #{tpu_custom_call.1} parent=11 // pred_region
          _
        $region24: #{tpu_custom_call.1} parent=11 // pred_fallthru
          _
      $region12: #{tpu_custom_call.1} parent=5 // pred_fallthru
        _
      %p207 = scmp.lt.s32.totalorder %s16, 2
      // Predicated region
      $region25: #{tpu_custom_call.1} parent=5 // pred_check
        %p208 = pneg %p207
      $region26: #{tpu_custom_call.1} parent=5 // pred_check_branch
        %210 = sbr.rel (%p208) target = $region28
      $region27: #{tpu_custom_call.1} parent=5 // pred_region
        // Predicated region
        $region29: #{tpu_custom_call.1} parent=27 // pred_check
          %p211 = pneg %p36
        $region30: #{tpu_custom_call.1} parent=27 // pred_check_branch
          %213 = sbr.rel (%p211) target = $region32
        $region31: #{tpu_custom_call.1} parent=27 // pred_region
          %s214 = smul.u32 16, %s16
          %p215 = scmp.lt.s32.totalorder %s214, 31
          %s216 = scalar_select %p215, %s214, 31
          %s217 = smul.addr %s216, 4
          %s218 = scalar_lea.vmem %s0, %s217
          %s219 = smul.u32 16, %s16
        $region32: #{tpu_custom_call.1} parent=27 // pred_fallthru
          _
      $region28: #{tpu_custom_call.1} parent=5 // pred_fallthru
        _
      %p220 = scmp.le.s32.totalorder 1, %s16
      %p221 = scmp.lt.s32.totalorder %s16, 3
      %p222 = pnand %p220, %p221
      %p223 = pneg %p222
      // Predicated region
      $region33: #{tpu_custom_call.1} parent=5 // pred_check
        _
      $region34: #{tpu_custom_call.1} parent=5 // pred_check_branch
        %225 = sbr.rel (%p222) target = $region36
      $region35: #{tpu_custom_call.1} parent=5 // pred_region
        %s226 = ssub.s32 %s16, 1
        %s227 = smul.u32 16, %s21
        %p228 = scmp.lt.s32.totalorder %s227, 31
        %s229 = scalar_select %p228, %s227, 31
        %s230 = smul.addr %s229, 4
        %s231 = scalar_lea.vmem %s0, %s230
        %p232 = pneg %p42
        %p233 = pneg %p39
        %p234 = pneg %p63
        %p235 = pneg %p60
        %p236 = pneg %p84
        %p237 = pneg %p81
        %p238 = pneg %p105
        %p239 = pneg %p102
        %p240 = pneg %p131
        %p241 = pneg %p128
        %s242 = sand.u32 %s118, 1
        %s243 = sand.u32 %s118, 1
        %s244 = smul.addr %s243, 128
        %s245 = scalar_lea.vmem [#allocation2], %s244
        %p246 = pneg %p157
        %p247 = pneg %p154
        %s248 = sand.u32 %s144, 1
        %s249 = scalar_lea.sflag [#allocation4], %s248
        %s250 = sand.u32 %s144, 1
        %s251 = smul.addr %s250, 2
        %s252 = scalar_lea.vmem [#allocation3], %s251
        %p253 = pneg %p183
        %p254 = pneg %p180
        %s255 = sand.u32 %s170, 1
        %s256 = sand.u32 %s170, 1
        %s257 = smul.addr %s256, 256
        %s258 = scalar_lea.vmem [#allocation5], %s257
        %s259 = smul.u32 16, %s21
        %p260 = scmp.lt.s32.totalorder %s259, 31
        %s261 = scalar_select %p260, %s259, 31
        %s262 = smul.addr %s261, 4
        %s263 = scalar_lea.vmem %s0, %s262
        %s264 = smul.u32 16, %s21
        %s265 = smul.u32 16, %s21
        %s266 = smul.u32 16, %s21
        %v268 = vld [vmem:[%s263] sm:$0xf]
        %v269 = vld [vmem:[%s263 + $0x4] sm:$0xf]
        %v270 = vld [vmem:[%s263 + $0x8] sm:$0xf]
        %v271 = vld [vmem:[%s263 + $0xc] sm:$0xf]
        %v272 = vld [vmem:[%s263 + $0x10] sm:$0xf]
        %v273 = vld [vmem:[%s263 + $0x14] sm:$0xf]
        %v274 = vld [vmem:[%s263 + $0x18] sm:$0xf]
        %v275 = vld [vmem:[%s263 + $0x1c] sm:$0xf]
        %v276 = vld [vmem:[%s263 + $0x20] sm:$0xf]
        %v277 = vld [vmem:[%s263 + $0x24] sm:$0xf]
        %v278 = vld [vmem:[%s263 + $0x28] sm:$0xf]
        %v279 = vld [vmem:[%s263 + $0x2c] sm:$0xf]
        %v280 = vld [vmem:[%s263 + $0x30] sm:$0xf]
        %v281 = vld [vmem:[%s263 + $0x34] sm:$0xf]
        %v282 = vld [vmem:[%s263 + $0x38] sm:$0xf]
        %v283 = vld [vmem:[%s263 + $0x3c] sm:$0xf]
        %v284 = vld [vmem:[%s1] sm:$0xf]
        %v285 = vld [vmem:[%s1 + $0x4] sm:$0xf]
        %v302 = vunpack.c.l.b16 %v268
        %v303 = vunpack.c.l.b16 %v269
        %v304 = vunpack.c.l.b16 %v270
        %v305 = vunpack.c.l.b16 %v271
        %v306 = vunpack.c.l.b16 %v272
        %v307 = vunpack.c.l.b16 %v273
        %v308 = vunpack.c.l.b16 %v274
        %v309 = vunpack.c.l.b16 %v275
        %v310 = vunpack.c.l.b16 %v276
        %v311 = vunpack.c.l.b16 %v277
        %v312 = vunpack.c.l.b16 %v278
        %v313 = vunpack.c.l.b16 %v279
        %v314 = vunpack.c.l.b16 %v280
        %v315 = vunpack.c.l.b16 %v281
        %v316 = vunpack.c.l.b16 %v282
        %v317 = vunpack.c.l.b16 %v283
        %v318 = vpack.c.b16 %v303, %v302
        %v319 = vpack.c.b16 %v305, %v304
        %v320 = vpack.c.b16 %v307, %v306
        %v321 = vpack.c.b16 %v309, %v308
        %v322 = vpack.c.b16 %v311, %v310
        %v323 = vpack.c.b16 %v313, %v312
        %v324 = vpack.c.b16 %v315, %v314
        %v325 = vpack.c.b16 %v317, %v316
        %v328 = vunpack.c.l.b16 %v284
        %v329 = vunpack.c.l.b16 %v285
        %v330 = vpack.c.b16 %v329, %v328
        %vm332 = vcmask 130048
        %v334 = vsel %vm332, %v318, 0
        %v337 = vsel %vm332, %v319, 0
        %v340 = vsel %vm332, %v320, 0
        %v343 = vsel %vm332, %v321, 0
        %v346 = vsel %vm332, %v322, 0
        %v349 = vsel %vm332, %v323, 0
        %v352 = vsel %vm332, %v324, 0
        %v355 = vsel %vm332, %v325, 0
        %357 = vmatprep.subr.bf16.mxu0 0
        %358 = vmatpush1.bf16.msra.mxu0 0
        %359 = vmatprep.subr.bf16.mxu0 0
        %360 = vmatpush1.bf16.msra.mxu0 0
        %361 = vmatprep.subr.bf16.mxu0 0
        %362 = vmatpush1.bf16.msra.mxu0 0
        %363 = vmatprep.subr.bf16.mxu0 0
        %364 = vmatpush1.bf16.msra.mxu0 0
        %365 = vmatprep.subr.bf16.mxu0 0
        %366 = vmatpush1.bf16.msra.mxu0 0
        %367 = vmatprep.subr.bf16.mxu0 0
        %368 = vmatpush1.bf16.msra.mxu0 0
        %369 = vmatprep.subr.bf16.mxu0 0
        %370 = vmatpush1.bf16.msra.mxu0 0
        %371 = vmatprep.subr.bf16.mxu0 0
        %372 = vmatpush1.bf16.msra.mxu0 %v330
        %373 = vmatprep.subr.bf16.mxu0 0
        %374 = vmatpush2.bf16.msra.mxu0 0
        %375 = vmatprep.subr.bf16.mxu0 0
        %376 = vmatpush2.bf16.msra.mxu0 0
        %377 = vmatprep.subr.bf16.mxu0 0
        %378 = vmatpush2.bf16.msra.mxu0 0
        %379 = vmatprep.subr.bf16.mxu0 0
        %380 = vmatpush2.bf16.msra.mxu0 0
        %381 = vmatprep.subr.bf16.mxu0 0
        %382 = vmatpush2.bf16.msra.mxu0 0
        %383 = vmatprep.subr.bf16.mxu0 0
        %384 = vmatpush2.bf16.msra.mxu0 0
        %385 = vmatprep.subr.bf16.mxu0 0
        %386 = vmatpush2.bf16.msra.mxu0 0
        %387 = vmatprep.subr.bf16.mxu0 0
        %388 = vmatpush2.bf16.msra.mxu0 0
        %389 = vmatprep.mubr.bf16.mxu0 0
        %390 = vmatmul.mubr.bf16.gmra.mxu0 %v334
        %v391 = vpop.f32.mrf.mxu0
        %v392 = vadd.f32 0.0, %v391
        %v393 = vpop.f32.mrf.mxu0
        %v394 = vpop.f32.mrf.mxu0
        %v395 = vadd.f32 0.0, %v394
        %v396 = vpop.f32.mrf.mxu0
        %397 = vmatprep.mubr.bf16.mxu0 0
        %398 = vmatmul.mubr.bf16.gmra.mxu0 %v337
        %v399 = vpop.f32.mrf.mxu0
        %v400 = vadd.f32 0.0, %v399
        %v401 = vpop.f32.mrf.mxu0
        %v402 = vpop.f32.mrf.mxu0
        %v403 = vadd.f32 0.0, %v402
        %v404 = vpop.f32.mrf.mxu0
        %405 = vmatprep.mubr.bf16.mxu0 0
        %406 = vmatmul.mubr.bf16.gmra.mxu0 %v340
        %v407 = vpop.f32.mrf.mxu0
        %v408 = vadd.f32 0.0, %v407
        %v409 = vpop.f32.mrf.mxu0
        %v410 = vpop.f32.mrf.mxu0
        %v411 = vadd.f32 0.0, %v410
        %v412 = vpop.f32.mrf.mxu0
        %413 = vmatprep.mubr.bf16.mxu0 0
        %414 = vmatmul.mubr.bf16.gmra.mxu0 %v343
        %v415 = vpop.f32.mrf.mxu0
        %v416 = vadd.f32 0.0, %v415
        %v417 = vpop.f32.mrf.mxu0
        %v418 = vpop.f32.mrf.mxu0
        %v419 = vadd.f32 0.0, %v418
        %v420 = vpop.f32.mrf.mxu0
        %421 = vmatprep.mubr.bf16.mxu0 0
        %422 = vmatmul.mubr.bf16.gmra.mxu0 %v346
        %v423 = vpop.f32.mrf.mxu0
        %v424 = vadd.f32 0.0, %v423
        %v425 = vpop.f32.mrf.mxu0
        %v426 = vpop.f32.mrf.mxu0
        %v427 = vadd.f32 0.0, %v426
        %v428 = vpop.f32.mrf.mxu0
        %429 = vmatprep.mubr.bf16.mxu0 0
        %430 = vmatmul.mubr.bf16.gmra.mxu0 %v349
        %v431 = vpop.f32.mrf.mxu0
        %v432 = vadd.f32 0.0, %v431
        %v433 = vpop.f32.mrf.mxu0
        %v434 = vpop.f32.mrf.mxu0
        %v435 = vadd.f32 0.0, %v434
        %v436 = vpop.f32.mrf.mxu0
        %437 = vmatprep.mubr.bf16.mxu0 0
        %438 = vmatmul.mubr.bf16.gmra.mxu0 %v352
        %v439 = vpop.f32.mrf.mxu0
        %v440 = vadd.f32 0.0, %v439
        %v441 = vpop.f32.mrf.mxu0
        %v442 = vpop.f32.mrf.mxu0
        %v443 = vadd.f32 0.0, %v442
        %v444 = vpop.f32.mrf.mxu0
        %445 = vmatprep.mubr.bf16.mxu0 0
        %446 = vmatmul.mubr.bf16.gmra.mxu0 %v355
        %v447 = vpop.f32.mrf.mxu0
        %v448 = vadd.f32 0.0, %v447
        %v449 = vpop.f32.mrf.mxu0
        %v450 = vpop.f32.mrf.mxu0
        %v451 = vadd.f32 0.0, %v450
        %v452 = vpop.f32.mrf.mxu0
        %453 = vdwg.mxu0
        %v454 = vpack.c.bf16 %v395, %v392
        %v455 = vpack.c.bf16 %v403, %v400
        %v456 = vpack.c.bf16 %v411, %v408
        %v457 = vpack.c.bf16 %v419, %v416
        %v458 = vpack.c.bf16 %v427, %v424
        %v459 = vpack.c.bf16 %v435, %v432
        %v460 = vpack.c.bf16 %v443, %v440
        %v461 = vpack.c.bf16 %v451, %v448
        %v470 = vunpack.c.l.b16 %v454
        %v471 = vunpack.c.h.b16 %v454
        %v472 = vunpack.c.l.b16 %v455
        %v473 = vunpack.c.h.b16 %v455
        %v474 = vunpack.c.l.b16 %v456
        %v475 = vunpack.c.h.b16 %v456
        %v476 = vunpack.c.l.b16 %v457
        %v477 = vunpack.c.h.b16 %v457
        %v478 = vunpack.c.l.b16 %v458
        %v479 = vunpack.c.h.b16 %v458
        %v480 = vunpack.c.l.b16 %v459
        %v481 = vunpack.c.h.b16 %v459
        %v482 = vunpack.c.l.b16 %v460
        %v483 = vunpack.c.h.b16 %v460
        %v484 = vunpack.c.l.b16 %v461
        %v485 = vunpack.c.h.b16 %v461
        %v486 = vpack.c.b16 %v470, %v470
        %v487 = vpack.c.b16 %v471, %v471
        %v488 = vpack.c.b16 %v472, %v472
        %v489 = vpack.c.b16 %v473, %v473
        %v490 = vpack.c.b16 %v474, %v474
        %v491 = vpack.c.b16 %v475, %v475
        %v492 = vpack.c.b16 %v476, %v476
        %v493 = vpack.c.b16 %v477, %v477
        %v494 = vpack.c.b16 %v478, %v478
        %v495 = vpack.c.b16 %v479, %v479
        %v496 = vpack.c.b16 %v480, %v480
        %v497 = vpack.c.b16 %v481, %v481
        %v498 = vpack.c.b16 %v482, %v482
        %v499 = vpack.c.b16 %v483, %v483
        %v500 = vpack.c.b16 %v484, %v484
        %v501 = vpack.c.b16 %v485, %v485
        %vm518 = vcmask 257024
        %519 = vst.msk [vmem:[%s245] sm:$0xf] %vm518, %v486
        %520 = vst.msk [vmem:[%s245 + $0x4] sm:$0xf] %vm518, %v487
        %521 = vst.msk [vmem:[%s245 + $0x8] sm:$0xf] %vm518, %v488
        %522 = vst.msk [vmem:[%s245 + $0xc] sm:$0xf] %vm518, %v489
        %523 = vst.msk [vmem:[%s245 + $0x10] sm:$0xf] %vm518, %v490
        %524 = vst.msk [vmem:[%s245 + $0x14] sm:$0xf] %vm518, %v491
        %525 = vst.msk [vmem:[%s245 + $0x18] sm:$0xf] %vm518, %v492
        %526 = vst.msk [vmem:[%s245 + $0x1c] sm:$0xf] %vm518, %v493
        %527 = vst.msk [vmem:[%s245 + $0x20] sm:$0xf] %vm518, %v494
        %528 = vst.msk [vmem:[%s245 + $0x24] sm:$0xf] %vm518, %v495
        %529 = vst.msk [vmem:[%s245 + $0x28] sm:$0xf] %vm518, %v496
        %530 = vst.msk [vmem:[%s245 + $0x2c] sm:$0xf] %vm518, %v497
        %531 = vst.msk [vmem:[%s245 + $0x30] sm:$0xf] %vm518, %v498
        %532 = vst.msk [vmem:[%s245 + $0x34] sm:$0xf] %vm518, %v499
        %533 = vst.msk [vmem:[%s245 + $0x38] sm:$0xf] %vm518, %v500
        %534 = vst.msk [vmem:[%s245 + $0x3c] sm:$0xf] %vm518, %v501
        %v535 = vld [vmem:[%s3] sm:$0xf]
        %v536 = vld [vmem:[%s3 + $0x4] sm:$0xf]
        %v537 = vld [vmem:[%s3 + $0x8] sm:$0xf]
        %v538 = vld [vmem:[%s3 + $0xc] sm:$0xf]
        %v543 = vunpack.c.l.b16 %v535
        %v544 = vunpack.c.l.b16 %v536
        %v545 = vunpack.c.l.b16 %v537
        %v546 = vunpack.c.l.b16 %v538
        %v547 = vpack.c.b16 %v544, %v543
        %v548 = vpack.c.b16 %v546, %v545
        %vm551 = vcmask 261120
        %v553 = vsel %vm551, %v454, 0
        %v556 = vsel %vm551, %v455, 0
        %v559 = vsel %vm551, %v456, 0
        %v562 = vsel %vm551, %v457, 0
        %v565 = vsel %vm551, %v458, 0
        %v568 = vsel %vm551, %v459, 0
        %v571 = vsel %vm551, %v460, 0
        %v574 = vsel %vm551, %v461, 0
        %576 = vmatprep.subr.bf16.mxu0 0
        %577 = vmatpush1.bf16.msra.mxu0 0
        %578 = vmatprep.subr.bf16.mxu0 0
        %579 = vmatpush1.bf16.msra.mxu0 0
        %580 = vmatprep.subr.bf16.mxu0 0
        %581 = vmatpush1.bf16.msra.mxu0 0
        %582 = vmatprep.subr.bf16.mxu0 0
        %583 = vmatpush1.bf16.msra.mxu0 0
        %584 = vmatprep.subr.bf16.mxu0 0
        %585 = vmatpush1.bf16.msra.mxu0 0
        %586 = vmatprep.subr.bf16.mxu0 0
        %587 = vmatpush1.bf16.msra.mxu0 0
        %588 = vmatprep.subr.bf16.mxu0 0
        %589 = vmatpush1.bf16.msra.mxu0 %v548
        %590 = vmatprep.subr.bf16.mxu0 0
        %591 = vmatpush1.bf16.msra.mxu0 %v547
        %592 = vmatprep.subr.bf16.mxu0 0
        %593 = vmatpush2.bf16.msra.mxu0 0
        %594 = vmatprep.subr.bf16.mxu0 0
        %595 = vmatpush2.bf16.msra.mxu0 0
        %596 = vmatprep.subr.bf16.mxu0 0
        %597 = vmatpush2.bf16.msra.mxu0 0
        %598 = vmatprep.subr.bf16.mxu0 0
        %599 = vmatpush2.bf16.msra.mxu0 0
        %600 = vmatprep.subr.bf16.mxu0 0
        %601 = vmatpush2.bf16.msra.mxu0 0
        %602 = vmatprep.subr.bf16.mxu0 0
        %603 = vmatpush2.bf16.msra.mxu0 0
        %604 = vmatprep.subr.bf16.mxu0 0
        %605 = vmatpush2.bf16.msra.mxu0 0
        %606 = vmatprep.subr.bf16.mxu0 0
        %607 = vmatpush2.bf16.msra.mxu0 0
        %608 = vmatprep.mubr.bf16.mxu0 0
        %609 = vmatmul.mubr.bf16.gmra.mxu0 %v553
        %v610 = vpop.f32.mrf.mxu0
        %v611 = vadd.f32 0.0, %v610
        %v612 = vpop.f32.mrf.mxu0
        %v613 = vpop.f32.mrf.mxu0
        %v614 = vadd.f32 0.0, %v613
        %v615 = vpop.f32.mrf.mxu0
        %616 = vmatprep.mubr.bf16.mxu0 0
        %617 = vmatmul.mubr.bf16.gmra.mxu0 %v556
        %v618 = vpop.f32.mrf.mxu0
        %v619 = vadd.f32 0.0, %v618
        %v620 = vpop.f32.mrf.mxu0
        %v621 = vpop.f32.mrf.mxu0
        %v622 = vadd.f32 0.0, %v621
        %v623 = vpop.f32.mrf.mxu0
        %624 = vmatprep.mubr.bf16.mxu0 0
        %625 = vmatmul.mubr.bf16.gmra.mxu0 %v559
        %v626 = vpop.f32.mrf.mxu0
        %v627 = vadd.f32 0.0, %v626
        %v628 = vpop.f32.mrf.mxu0
        %v629 = vpop.f32.mrf.mxu0
        %v630 = vadd.f32 0.0, %v629
        %v631 = vpop.f32.mrf.mxu0
        %632 = vmatprep.mubr.bf16.mxu0 0
        %633 = vmatmul.mubr.bf16.gmra.mxu0 %v562
        %v634 = vpop.f32.mrf.mxu0
        %v635 = vadd.f32 0.0, %v634
        %v636 = vpop.f32.mrf.mxu0
        %v637 = vpop.f32.mrf.mxu0
        %v638 = vadd.f32 0.0, %v637
        %v639 = vpop.f32.mrf.mxu0
        %640 = vmatprep.mubr.bf16.mxu0 0
        %641 = vmatmul.mubr.bf16.gmra.mxu0 %v565
        %v642 = vpop.f32.mrf.mxu0
        %v643 = vadd.f32 0.0, %v642
        %v644 = vpop.f32.mrf.mxu0
        %v645 = vpop.f32.mrf.mxu0
        %v646 = vadd.f32 0.0, %v645
        %v647 = vpop.f32.mrf.mxu0
        %648 = vmatprep.mubr.bf16.mxu0 0
        %649 = vmatmul.mubr.bf16.gmra.mxu0 %v568
        %v650 = vpop.f32.mrf.mxu0
        %v651 = vadd.f32 0.0, %v650
        %v652 = vpop.f32.mrf.mxu0
        %v653 = vpop.f32.mrf.mxu0
        %v654 = vadd.f32 0.0, %v653
        %v655 = vpop.f32.mrf.mxu0
        %656 = vmatprep.mubr.bf16.mxu0 0
        %657 = vmatmul.mubr.bf16.gmra.mxu0 %v571
        %v658 = vpop.f32.mrf.mxu0
        %v659 = vadd.f32 0.0, %v658
        %v660 = vpop.f32.mrf.mxu0
        %v661 = vpop.f32.mrf.mxu0
        %v662 = vadd.f32 0.0, %v661
        %v663 = vpop.f32.mrf.mxu0
        %664 = vmatprep.mubr.bf16.mxu0 0
        %665 = vmatmul.mubr.bf16.gmra.mxu0 %v574
        %v666 = vpop.f32.mrf.mxu0
        %v667 = vadd.f32 0.0, %v666
        %v668 = vpop.f32.mrf.mxu0
        %v669 = vpop.f32.mrf.mxu0
        %v670 = vadd.f32 0.0, %v669
        %v671 = vpop.f32.mrf.mxu0
        %672 = vdwg.mxu0
        %vm673 = vcmask 7168
        %674 = vst.msk [vmem:[%s258] sm:$0xff] %vm673, %v611
        %675 = vst.msk [vmem:[%s258 + $0x8] sm:$0xff] %vm673, %v614
        %676 = vst.msk [vmem:[%s258 + $0x10] sm:$0xff] %vm673, %v619
        %677 = vst.msk [vmem:[%s258 + $0x18] sm:$0xff] %vm673, %v622
        %678 = vst.msk [vmem:[%s258 + $0x20] sm:$0xff] %vm673, %v627
        %679 = vst.msk [vmem:[%s258 + $0x28] sm:$0xff] %vm673, %v630
        %680 = vst.msk [vmem:[%s258 + $0x30] sm:$0xff] %vm673, %v635
        %681 = vst.msk [vmem:[%s258 + $0x38] sm:$0xff] %vm673, %v638
        %682 = vst.msk [vmem:[%s258 + $0x40] sm:$0xff] %vm673, %v643
        %683 = vst.msk [vmem:[%s258 + $0x48] sm:$0xff] %vm673, %v646
        %684 = vst.msk [vmem:[%s258 + $0x50] sm:$0xff] %vm673, %v651
        %685 = vst.msk [vmem:[%s258 + $0x58] sm:$0xff] %vm673, %v654
        %686 = vst.msk [vmem:[%s258 + $0x60] sm:$0xff] %vm673, %v659
        %687 = vst.msk [vmem:[%s258 + $0x68] sm:$0xff] %vm673, %v662
        %688 = vst.msk [vmem:[%s258 + $0x70] sm:$0xff] %vm673, %v667
        %689 = vst.msk [vmem:[%s258 + $0x78] sm:$0xff] %vm673, %v670
        %v690 = vld [vmem:[%s2] sm:$0x1]
        %v692 = vsel %vm551, %v690, 0
        %694 = vmatprep.subr.bf16.mxu0 0
        %695 = vmatpush1.bf16.xpose.msra.mxu0 %v574
        %696 = vmatprep.subr.bf16.mxu0 0
        %697 = vmatpush1.bf16.xpose.msra.mxu0 %v571
        %698 = vmatprep.subr.bf16.mxu0 0
        %699 = vmatpush1.bf16.xpose.msra.mxu0 %v568
        %700 = vmatprep.subr.bf16.mxu0 0
        %701 = vmatpush1.bf16.xpose.msra.mxu0 %v565
        %702 = vmatprep.subr.bf16.mxu0 0
        %703 = vmatpush1.bf16.xpose.msra.mxu0 %v562
        %704 = vmatprep.subr.bf16.mxu0 0
        %705 = vmatpush1.bf16.xpose.msra.mxu0 %v559
        %706 = vmatprep.subr.bf16.mxu0 0
        %707 = vmatpush1.bf16.xpose.msra.mxu0 %v556
        %708 = vmatprep.subr.bf16.mxu0 0
        %709 = vmatpush1.bf16.xpose.msra.mxu0 %v553
        %710 = vmatprep.subr.bf16.mxu0 0
        %711 = vmatpush2.bf16.xpose.msra.mxu0 0
        %712 = vmatprep.subr.bf16.mxu0 0
        %713 = vmatpush2.bf16.xpose.msra.mxu0 0
        %714 = vmatprep.subr.bf16.mxu0 0
        %715 = vmatpush2.bf16.xpose.msra.mxu0 0
        %716 = vmatprep.subr.bf16.mxu0 0
        %717 = vmatpush2.bf16.xpose.msra.mxu0 0
        %718 = vmatprep.subr.bf16.mxu0 0
        %719 = vmatpush2.bf16.xpose.msra.mxu0 0
        %720 = vmatprep.subr.bf16.mxu0 0
        %721 = vmatpush2.bf16.xpose.msra.mxu0 0
        %722 = vmatprep.subr.bf16.mxu0 0
        %723 = vmatpush2.bf16.xpose.msra.mxu0 0
        %724 = vmatprep.subr.bf16.mxu0 0
        %725 = vmatpush2.bf16.xpose.msra.mxu0 0
        %726 = vmatprep.mubr.bf16.mxu0 0
        %727 = vmatmul.mubr.bf16.gmra.mxu0 %v692
        %v728 = vpop.f32.mrf.mxu0
        %v729 = vadd.f32 0.0, %v728
        %v730 = vpop.f32.mrf.mxu0
        %v731 = vpop.f32.mrf.mxu0
        %v732 = vpop.f32.mrf.mxu0
        %733 = vdwg.mxu0
        %734 = vst [vmem:[%s252] sm:$0x1] %v729
        %s735 = scalar_lea.vmem %s1, 8
        %v736 = vld [vmem:[%s735] sm:$0xf]
        %v737 = vld [vmem:[%s735 + $0x4] sm:$0xf]
        %v740 = vunpack.c.l.b16 %v736
        %v741 = vunpack.c.l.b16 %v737
        %v742 = vpack.c.b16 %v741, %v740
        %744 = vmatprep.subr.bf16.mxu0 0
        %745 = vmatpush1.bf16.msra.mxu0 0
        %746 = vmatprep.subr.bf16.mxu0 0
        %747 = vmatpush1.bf16.msra.mxu0 0
        %748 = vmatprep.subr.bf16.mxu0 0
        %749 = vmatpush1.bf16.msra.mxu0 0
        %750 = vmatprep.subr.bf16.mxu0 0
        %751 = vmatpush1.bf16.msra.mxu0 0
        %752 = vmatprep.subr.bf16.mxu0 0
        %753 = vmatpush1.bf16.msra.mxu0 0
        %754 = vmatprep.subr.bf16.mxu0 0
        %755 = vmatpush1.bf16.msra.mxu0 0
        %756 = vmatprep.subr.bf16.mxu0 0
        %757 = vmatpush1.bf16.msra.mxu0 0
        %758 = vmatprep.subr.bf16.mxu0 0
        %759 = vmatpush1.bf16.msra.mxu0 %v742
        %760 = vmatprep.subr.bf16.mxu0 0
        %761 = vmatpush2.bf16.msra.mxu0 0
        %762 = vmatprep.subr.bf16.mxu0 0
        %763 = vmatpush2.bf16.msra.mxu0 0
        %764 = vmatprep.subr.bf16.mxu0 0
        %765 = vmatpush2.bf16.msra.mxu0 0
        %766 = vmatprep.subr.bf16.mxu0 0
        %767 = vmatpush2.bf16.msra.mxu0 0
        %768 = vmatprep.subr.bf16.mxu0 0
        %769 = vmatpush2.bf16.msra.mxu0 0
        %770 = vmatprep.subr.bf16.mxu0 0
        %771 = vmatpush2.bf16.msra.mxu0 0
        %772 = vmatprep.subr.bf16.mxu0 0
        %773 = vmatpush2.bf16.msra.mxu0 0
        %774 = vmatprep.subr.bf16.mxu0 0
        %775 = vmatpush2.bf16.msra.mxu0 0
        %776 = vmatprep.mubr.bf16.mxu0 0
        %777 = vmatmul.mubr.bf16.gmra.mxu0 %v334
        %v778 = vpop.f32.mrf.mxu0
        %v779 = vadd.f32 0.0, %v778
        %v780 = vpop.f32.mrf.mxu0
        %v781 = vpop.f32.mrf.mxu0
        %v782 = vadd.f32 0.0, %v781
        %v783 = vpop.f32.mrf.mxu0
        %784 = vmatprep.mubr.bf16.mxu0 0
        %785 = vmatmul.mubr.bf16.gmra.mxu0 %v337
        %v786 = vpop.f32.mrf.mxu0
        %v787 = vadd.f32 0.0, %v786
        %v788 = vpop.f32.mrf.mxu0
        %v789 = vpop.f32.mrf.mxu0
        %v790 = vadd.f32 0.0, %v789
        %v791 = vpop.f32.mrf.mxu0
        %792 = vmatprep.mubr.bf16.mxu0 0
        %793 = vmatmul.mubr.bf16.gmra.mxu0 %v340
        %v794 = vpop.f32.mrf.mxu0
        %v795 = vadd.f32 0.0, %v794
        %v796 = vpop.f32.mrf.mxu0
        %v797 = vpop.f32.mrf.mxu0
        %v798 = vadd.f32 0.0, %v797
        %v799 = vpop.f32.mrf.mxu0
        %800 = vmatprep.mubr.bf16.mxu0 0
        %801 = vmatmul.mubr.bf16.gmra.mxu0 %v343
        %v802 = vpop.f32.mrf.mxu0
        %v803 = vadd.f32 0.0, %v802
        %v804 = vpop.f32.mrf.mxu0
        %v805 = vpop.f32.mrf.mxu0
        %v806 = vadd.f32 0.0, %v805
        %v807 = vpop.f32.mrf.mxu0
        %808 = vmatprep.mubr.bf16.mxu0 0
        %809 = vmatmul.mubr.bf16.gmra.mxu0 %v346
        %v810 = vpop.f32.mrf.mxu0
        %v811 = vadd.f32 0.0, %v810
        %v812 = vpop.f32.mrf.mxu0
        %v813 = vpop.f32.mrf.mxu0
        %v814 = vadd.f32 0.0, %v813
        %v815 = vpop.f32.mrf.mxu0
        %816 = vmatprep.mubr.bf16.mxu0 0
        %817 = vmatmul.mubr.bf16.gmra.mxu0 %v349
        %v818 = vpop.f32.mrf.mxu0
        %v819 = vadd.f32 0.0, %v818
        %v820 = vpop.f32.mrf.mxu0
        %v821 = vpop.f32.mrf.mxu0
        %v822 = vadd.f32 0.0, %v821
        %v823 = vpop.f32.mrf.mxu0
        %824 = vmatprep.mubr.bf16.mxu0 0
        %825 = vmatmul.mubr.bf16.gmra.mxu0 %v352
        %v826 = vpop.f32.mrf.mxu0
        %v827 = vadd.f32 0.0, %v826
        %v828 = vpop.f32.mrf.mxu0
        %v829 = vpop.f32.mrf.mxu0
        %v830 = vadd.f32 0.0, %v829
        %v831 = vpop.f32.mrf.mxu0
        %832 = vmatprep.mubr.bf16.mxu0 0
        %833 = vmatmul.mubr.bf16.gmra.mxu0 %v355
        %v834 = vpop.f32.mrf.mxu0
        %v835 = vadd.f32 0.0, %v834
        %v836 = vpop.f32.mrf.mxu0
        %v837 = vpop.f32.mrf.mxu0
        %v838 = vadd.f32 0.0, %v837
        %v839 = vpop.f32.mrf.mxu0
        %840 = vdwg.mxu0
        %v841 = vpack.c.bf16 %v782, %v779
        %v842 = vpack.c.bf16 %v790, %v787
        %v843 = vpack.c.bf16 %v798, %v795
        %v844 = vpack.c.bf16 %v806, %v803
        %v845 = vpack.c.bf16 %v814, %v811
        %v846 = vpack.c.bf16 %v822, %v819
        %v847 = vpack.c.bf16 %v830, %v827
        %v848 = vpack.c.bf16 %v838, %v835
        %v857 = vunpack.c.l.b16 %v841
        %v858 = vunpack.c.h.b16 %v841
        %v859 = vunpack.c.l.b16 %v842
        %v860 = vunpack.c.h.b16 %v842
        %v861 = vunpack.c.l.b16 %v843
        %v862 = vunpack.c.h.b16 %v843
        %v863 = vunpack.c.l.b16 %v844
        %v864 = vunpack.c.h.b16 %v844
        %v865 = vunpack.c.l.b16 %v845
        %v866 = vunpack.c.h.b16 %v845
        %v867 = vunpack.c.l.b16 %v846
        %v868 = vunpack.c.h.b16 %v846
        %v869 = vunpack.c.l.b16 %v847
        %v870 = vunpack.c.h.b16 %v847
        %v871 = vunpack.c.l.b16 %v848
        %v872 = vunpack.c.h.b16 %v848
        %v873 = vpack.c.b16 %v857, %v857
        %v874 = vpack.c.b16 %v858, %v858
        %v875 = vpack.c.b16 %v859, %v859
        %v876 = vpack.c.b16 %v860, %v860
        %v877 = vpack.c.b16 %v861, %v861
        %v878 = vpack.c.b16 %v862, %v862
        %v879 = vpack.c.b16 %v863, %v863
        %v880 = vpack.c.b16 %v864, %v864
        %v881 = vpack.c.b16 %v865, %v865
        %v882 = vpack.c.b16 %v866, %v866
        %v883 = vpack.c.b16 %v867, %v867
        %v884 = vpack.c.b16 %v868, %v868
        %v885 = vpack.c.b16 %v869, %v869
        %v886 = vpack.c.b16 %v870, %v870
        %v887 = vpack.c.b16 %v871, %v871
        %v888 = vpack.c.b16 %v872, %v872
        %s905 = scalar_lea.vmem %s245, 64 [#allocation2]
        %906 = vst.msk [vmem:[%s905] sm:$0xf] %vm518, %v873
        %907 = vst.msk [vmem:[%s905 + $0x4] sm:$0xf] %vm518, %v874
        %908 = vst.msk [vmem:[%s905 + $0x8] sm:$0xf] %vm518, %v875
        %909 = vst.msk [vmem:[%s905 + $0xc] sm:$0xf] %vm518, %v876
        %910 = vst.msk [vmem:[%s905 + $0x10] sm:$0xf] %vm518, %v877
        %911 = vst.msk [vmem:[%s905 + $0x14] sm:$0xf] %vm518, %v878
        %912 = vst.msk [vmem:[%s905 + $0x18] sm:$0xf] %vm518, %v879
        %913 = vst.msk [vmem:[%s905 + $0x1c] sm:$0xf] %vm518, %v880
        %914 = vst.msk [vmem:[%s905 + $0x20] sm:$0xf] %vm518, %v881
        %915 = vst.msk [vmem:[%s905 + $0x24] sm:$0xf] %vm518, %v882
        %916 = vst.msk [vmem:[%s905 + $0x28] sm:$0xf] %vm518, %v883
        %917 = vst.msk [vmem:[%s905 + $0x2c] sm:$0xf] %vm518, %v884
        %918 = vst.msk [vmem:[%s905 + $0x30] sm:$0xf] %vm518, %v885
        %919 = vst.msk [vmem:[%s905 + $0x34] sm:$0xf] %vm518, %v886
        %920 = vst.msk [vmem:[%s905 + $0x38] sm:$0xf] %vm518, %v887
        %921 = vst.msk [vmem:[%s905 + $0x3c] sm:$0xf] %vm518, %v888
        %s922 = scalar_lea.vmem %s3, 16
        %v923 = vld [vmem:[%s922] sm:$0xf]
        %v924 = vld [vmem:[%s922 + $0x4] sm:$0xf]
        %v925 = vld [vmem:[%s922 + $0x8] sm:$0xf]
        %v926 = vld [vmem:[%s922 + $0xc] sm:$0xf]
        %v931 = vunpack.c.l.b16 %v923
        %v932 = vunpack.c.l.b16 %v924
        %v933 = vunpack.c.l.b16 %v925
        %v934 = vunpack.c.l.b16 %v926
        %v935 = vpack.c.b16 %v932, %v931
        %v936 = vpack.c.b16 %v934, %v933
        %v940 = vsel %vm551, %v841, 0
        %v943 = vsel %vm551, %v842, 0
        %v946 = vsel %vm551, %v843, 0
        %v949 = vsel %vm551, %v844, 0
        %v952 = vsel %vm551, %v845, 0
        %v955 = vsel %vm551, %v846, 0
        %v958 = vsel %vm551, %v847, 0
        %v961 = vsel %vm551, %v848, 0
        %963 = vmatprep.subr.bf16.mxu0 0
        %964 = vmatpush1.bf16.msra.mxu0 0
        %965 = vmatprep.subr.bf16.mxu0 0
        %966 = vmatpush1.bf16.msra.mxu0 0
        %967 = vmatprep.subr.bf16.mxu0 0
        %968 = vmatpush1.bf16.msra.mxu0 0
        %969 = vmatprep.subr.bf16.mxu0 0
        %970 = vmatpush1.bf16.msra.mxu0 0
        %971 = vmatprep.subr.bf16.mxu0 0
        %972 = vmatpush1.bf16.msra.mxu0 0
        %973 = vmatprep.subr.bf16.mxu0 0
        %974 = vmatpush1.bf16.msra.mxu0 0
        %975 = vmatprep.subr.bf16.mxu0 0
        %976 = vmatpush1.bf16.msra.mxu0 %v936
        %977 = vmatprep.subr.bf16.mxu0 0
        %978 = vmatpush1.bf16.msra.mxu0 %v935
        %979 = vmatprep.subr.bf16.mxu0 0
        %980 = vmatpush2.bf16.msra.mxu0 0
        %981 = vmatprep.subr.bf16.mxu0 0
        %982 = vmatpush2.bf16.msra.mxu0 0
        %983 = vmatprep.subr.bf16.mxu0 0
        %984 = vmatpush2.bf16.msra.mxu0 0
        %985 = vmatprep.subr.bf16.mxu0 0
        %986 = vmatpush2.bf16.msra.mxu0 0
        %987 = vmatprep.subr.bf16.mxu0 0
        %988 = vmatpush2.bf16.msra.mxu0 0
        %989 = vmatprep.subr.bf16.mxu0 0
        %990 = vmatpush2.bf16.msra.mxu0 0
        %991 = vmatprep.subr.bf16.mxu0 0
        %992 = vmatpush2.bf16.msra.mxu0 0
        %993 = vmatprep.subr.bf16.mxu0 0
        %994 = vmatpush2.bf16.msra.mxu0 0
        %995 = vmatprep.mubr.bf16.mxu0 0
        %996 = vmatmul.mubr.bf16.gmra.mxu0 %v940
        %v997 = vpop.f32.mrf.mxu0
        %v998 = vadd.f32 0.0, %v997
        %v999 = vpop.f32.mrf.mxu0
        %v1000 = vpop.f32.mrf.mxu0
        %v1001 = vadd.f32 0.0, %v1000
        %v1002 = vpop.f32.mrf.mxu0
        %1003 = vmatprep.mubr.bf16.mxu0 0
        %1004 = vmatmul.mubr.bf16.gmra.mxu0 %v943
        %v1005 = vpop.f32.mrf.mxu0
        %v1006 = vadd.f32 0.0, %v1005
        %v1007 = vpop.f32.mrf.mxu0
        %v1008 = vpop.f32.mrf.mxu0
        %v1009 = vadd.f32 0.0, %v1008
        %v1010 = vpop.f32.mrf.mxu0
        %1011 = vmatprep.mubr.bf16.mxu0 0
        %1012 = vmatmul.mubr.bf16.gmra.mxu0 %v946
        %v1013 = vpop.f32.mrf.mxu0
        %v1014 = vadd.f32 0.0, %v1013
        %v1015 = vpop.f32.mrf.mxu0
        %v1016 = vpop.f32.mrf.mxu0
        %v1017 = vadd.f32 0.0, %v1016
        %v1018 = vpop.f32.mrf.mxu0
        %1019 = vmatprep.mubr.bf16.mxu0 0
        %1020 = vmatmul.mubr.bf16.gmra.mxu0 %v949
        %v1021 = vpop.f32.mrf.mxu0
        %v1022 = vadd.f32 0.0, %v1021
        %v1023 = vpop.f32.mrf.mxu0
        %v1024 = vpop.f32.mrf.mxu0
        %v1025 = vadd.f32 0.0, %v1024
        %v1026 = vpop.f32.mrf.mxu0
        %1027 = vmatprep.mubr.bf16.mxu0 0
        %1028 = vmatmul.mubr.bf16.gmra.mxu0 %v952
        %v1029 = vpop.f32.mrf.mxu0
        %v1030 = vadd.f32 0.0, %v1029
        %v1031 = vpop.f32.mrf.mxu0
        %v1032 = vpop.f32.mrf.mxu0
        %v1033 = vadd.f32 0.0, %v1032
        %v1034 = vpop.f32.mrf.mxu0
        %1035 = vmatprep.mubr.bf16.mxu0 0
        %1036 = vmatmul.mubr.bf16.gmra.mxu0 %v955
        %v1037 = vpop.f32.mrf.mxu0
        %v1038 = vadd.f32 0.0, %v1037
        %v1039 = vpop.f32.mrf.mxu0
        %v1040 = vpop.f32.mrf.mxu0
        %v1041 = vadd.f32 0.0, %v1040
        %v1042 = vpop.f32.mrf.mxu0
        %1043 = vmatprep.mubr.bf16.mxu0 0
        %1044 = vmatmul.mubr.bf16.gmra.mxu0 %v958
        %v1045 = vpop.f32.mrf.mxu0
        %v1046 = vadd.f32 0.0, %v1045
        %v1047 = vpop.f32.mrf.mxu0
        %v1048 = vpop.f32.mrf.mxu0
        %v1049 = vadd.f32 0.0, %v1048
        %v1050 = vpop.f32.mrf.mxu0
        %1051 = vmatprep.mubr.bf16.mxu0 0
        %1052 = vmatmul.mubr.bf16.gmra.mxu0 %v961
        %v1053 = vpop.f32.mrf.mxu0
        %v1054 = vadd.f32 0.0, %v1053
        %v1055 = vpop.f32.mrf.mxu0
        %v1056 = vpop.f32.mrf.mxu0
        %v1057 = vadd.f32 0.0, %v1056
        %v1058 = vpop.f32.mrf.mxu0
        %1059 = vdwg.mxu0
        %s1060 = scalar_lea.vmem %s258, 128 [#allocation5]
        %1061 = vst.msk [vmem:[%s1060] sm:$0xff] %vm673, %v998
        %1062 = vst.msk [vmem:[%s1060 + $0x8] sm:$0xff] %vm673, %v1001
        %1063 = vst.msk [vmem:[%s1060 + $0x10] sm:$0xff] %vm673, %v1006
        %1064 = vst.msk [vmem:[%s1060 + $0x18] sm:$0xff] %vm673, %v1009
        %1065 = vst.msk [vmem:[%s1060 + $0x20] sm:$0xff] %vm673, %v1014
        %1066 = vst.msk [vmem:[%s1060 + $0x28] sm:$0xff] %vm673, %v1017
        %1067 = vst.msk [vmem:[%s1060 + $0x30] sm:$0xff] %vm673, %v1022
        %1068 = vst.msk [vmem:[%s1060 + $0x38] sm:$0xff] %vm673, %v1025
        %1069 = vst.msk [vmem:[%s1060 + $0x40] sm:$0xff] %vm673, %v1030
        %1070 = vst.msk [vmem:[%s1060 + $0x48] sm:$0xff] %vm673, %v1033
        %1071 = vst.msk [vmem:[%s1060 + $0x50] sm:$0xff] %vm673, %v1038
        %1072 = vst.msk [vmem:[%s1060 + $0x58] sm:$0xff] %vm673, %v1041
        %1073 = vst.msk [vmem:[%s1060 + $0x60] sm:$0xff] %vm673, %v1046
        %1074 = vst.msk [vmem:[%s1060 + $0x68] sm:$0xff] %vm673, %v1049
        %1075 = vst.msk [vmem:[%s1060 + $0x70] sm:$0xff] %vm673, %v1054
        %1076 = vst.msk [vmem:[%s1060 + $0x78] sm:$0xff] %vm673, %v1057
        %s1077 = scalar_lea.vmem %s2, 1
        %v1078 = vld [vmem:[%s1077] sm:$0x1]
        %v1080 = vsel %vm551, %v1078, 0
        %1082 = vmatprep.subr.bf16.mxu0 0
        %1083 = vmatpush1.bf16.xpose.msra.mxu0 %v961
        %1084 = vmatprep.subr.bf16.mxu0 0
        %1085 = vmatpush1.bf16.xpose.msra.mxu0 %v958
        %1086 = vmatprep.subr.bf16.mxu0 0
        %1087 = vmatpush1.bf16.xpose.msra.mxu0 %v955
        %1088 = vmatprep.subr.bf16.mxu0 0
        %1089 = vmatpush1.bf16.xpose.msra.mxu0 %v952
        %1090 = vmatprep.subr.bf16.mxu0 0
        %1091 = vmatpush1.bf16.xpose.msra.mxu0 %v949
        %1092 = vmatprep.subr.bf16.mxu0 0
        %1093 = vmatpush1.bf16.xpose.msra.mxu0 %v946
        %1094 = vmatprep.subr.bf16.mxu0 0
        %1095 = vmatpush1.bf16.xpose.msra.mxu0 %v943
        %1096 = vmatprep.subr.bf16.mxu0 0
        %1097 = vmatpush1.bf16.xpose.msra.mxu0 %v940
        %1098 = vmatprep.subr.bf16.mxu0 0
        %1099 = vmatpush2.bf16.xpose.msra.mxu0 0
        %1100 = vmatprep.subr.bf16.mxu0 0
        %1101 = vmatpush2.bf16.xpose.msra.mxu0 0
        %1102 = vmatprep.subr.bf16.mxu0 0
        %1103 = vmatpush2.bf16.xpose.msra.mxu0 0
        %1104 = vmatprep.subr.bf16.mxu0 0
        %1105 = vmatpush2.bf16.xpose.msra.mxu0 0
        %1106 = vmatprep.subr.bf16.mxu0 0
        %1107 = vmatpush2.bf16.xpose.msra.mxu0 0
        %1108 = vmatprep.subr.bf16.mxu0 0
        %1109 = vmatpush2.bf16.xpose.msra.mxu0 0
        %1110 = vmatprep.subr.bf16.mxu0 0
        %1111 = vmatpush2.bf16.xpose.msra.mxu0 0
        %1112 = vmatprep.subr.bf16.mxu0 0
        %1113 = vmatpush2.bf16.xpose.msra.mxu0 0
        %1114 = vmatprep.mubr.bf16.mxu0 0
        %1115 = vmatmul.mubr.bf16.gmra.mxu0 %v1080
        %v1116 = vpop.f32.mrf.mxu0
        %v1117 = vadd.f32 0.0, %v1116
        %v1118 = vpop.f32.mrf.mxu0
        %v1119 = vpop.f32.mrf.mxu0
        %v1120 = vpop.f32.mrf.mxu0
        %1121 = vdwg.mxu0
        %s1122 = scalar_lea.vmem %s252, 1 [#allocation3]
        %1123 = vst [vmem:[%s1122] sm:$0x1] %v1117
        %s1124 = sand.u32 %s118, 1
        %s1125 = sand.u32 %s118, 1
        %s1126 = smul.addr %s1125, 128
        %s1127 = scalar_lea.vmem [#allocation2], %s1126
        %s1128 = sand.u32 %s144, 1
        %s1129 = scalar_lea.sflag [#allocation4], %s1128
        %s1130 = sand.u32 %s144, 1
        %s1131 = smul.addr %s1130, 2
        %s1132 = scalar_lea.vmem [#allocation3], %s1131
        %s1133 = sand.u32 %s170, 1
        %s1134 = sand.u32 %s170, 1
        %s1135 = smul.addr %s1134, 256
        %s1136 = scalar_lea.vmem [#allocation5], %s1135
        // Predicated region
        $region37: #{tpu_custom_call.1} parent=35 // pred_check
          %p1137 = pneg %p128
        $region38: #{tpu_custom_call.1} parent=35 // pred_check_branch
          %1139 = sbr.rel (%p1137) target = $region40
        $region39: #{tpu_custom_call.1} parent=35 // pred_region
          %s1140 = smul.u32 16, %s21
          %s1141 = smul.addr %s1140, 4
          %s1142 = scalar_lea.vmem %s4, %s1141
          // Predicated region
          $region41: #{tpu_custom_call.1} parent=39 // pred_check
            _
          $region42: #{tpu_custom_call.1} parent=39 // pred_check_branch
            %1144 = sbr.rel (0) target = $region44
          $region43: #{tpu_custom_call.1} parent=39 // pred_region
            // Predicated region
            $region45: #{tpu_custom_call.1} parent=43 // pred_check
              _
            $region46: #{tpu_custom_call.1} parent=43 // pred_check_branch
              %1146 = sbr.rel target = $region48
            $region47: #{tpu_custom_call.1} parent=43 // pred_region
              // Predicated region
              $region60: #{tpu_custom_call.1} parent=47 // pred_check
                _
              $region61: #{tpu_custom_call.1} parent=47 // pred_check_branch
                %1224 = sbr.rel (0) target = $region63
              $region62: #{tpu_custom_call.1} parent=47 // pred_region
                loop: start=0, step=1, limit=1
                $region64: #{tpu_custom_call.1} parent=62 // loop_pre_header
                  _
                $region65: #{tpu_custom_call.1} parent=62 // loop_header
                  %s1226 = sphi 0, %s1230
                  %p1227 = scmp.ge.s32.totalorder %s1226, 1
                  %s1231 = sphi %s1127, %s1127
                  %s1232 = sphi %s1142, %s1142
                $region66: #{tpu_custom_call.1} parent=62 // loop_header_branch
                  %1229 = sbr.rel (%p1227) target = $region70
                $region67: #{tpu_custom_call.1} parent=62 // loop_body
                  _
                $region68: #{tpu_custom_call.1} parent=62 // loop_footer
                  %s1230 = sadd.s32 1, %s1226
                $region69: #{tpu_custom_call.1} parent=62 // loop_footer_branch
                  %1225 = sbr.rel target = $region65
                $region70: #{tpu_custom_call.1} parent=62 // loop_exit
                  _
                %s1234 = ssub.s32 16, 1
                loop: start=0, step=1, limit=1
                $region71: #{tpu_custom_call.1} parent=62 // loop_pre_header
                  _
                $region72: #{tpu_custom_call.1} parent=62 // loop_header
                  %s1236 = sphi 0, %s1240
                  %p1237 = scmp.ge.s32.totalorder %s1236, 1
                  %s1241 = sphi %s1127, %s1127
                  %s1242 = sphi %s1142, %s1142
                $region73: #{tpu_custom_call.1} parent=62 // loop_header_branch
                  %1239 = sbr.rel (%p1237) target = $region77
                $region74: #{tpu_custom_call.1} parent=62 // loop_body
                  %v1243 = vld [vmem:[%s1241] sm:%s1234]
                  %1244 = vst [vmem:[%s1242] sm:%s1234] %v1243
                  %v1245 = vld [vmem:[%s1241 + $0x4] sm:%s1234]
                  %1246 = vst [vmem:[%s1242 + $0x4] sm:%s1234] %v1245
                  %v1247 = vld [vmem:[%s1241 + $0x8] sm:%s1234]
                  %1248 = vst [vmem:[%s1242 + $0x8] sm:%s1234] %v1247
                  %v1249 = vld [vmem:[%s1241 + $0xc] sm:%s1234]
                  %1250 = vst [vmem:[%s1242 + $0xc] sm:%s1234] %v1249
                  %v1251 = vld [vmem:[%s1241 + $0x10] sm:%s1234]
                  %1252 = vst [vmem:[%s1242 + $0x10] sm:%s1234] %v1251
                  %v1253 = vld [vmem:[%s1241 + $0x14] sm:%s1234]
                  %1254 = vst [vmem:[%s1242 + $0x14] sm:%s1234] %v1253
                  %v1255 = vld [vmem:[%s1241 + $0x18] sm:%s1234]
                  %1256 = vst [vmem:[%s1242 + $0x18] sm:%s1234] %v1255
                  %v1257 = vld [vmem:[%s1241 + $0x1c] sm:%s1234]
                  %1258 = vst [vmem:[%s1242 + $0x1c] sm:%s1234] %v1257
                  %v1259 = vld [vmem:[%s1241 + $0x20] sm:%s1234]
                  %1260 = vst [vmem:[%s1242 + $0x20] sm:%s1234] %v1259
                  %v1261 = vld [vmem:[%s1241 + $0x24] sm:%s1234]
                  %1262 = vst [vmem:[%s1242 + $0x24] sm:%s1234] %v1261
                  %v1263 = vld [vmem:[%s1241 + $0x28] sm:%s1234]
                  %1264 = vst [vmem:[%s1242 + $0x28] sm:%s1234] %v1263
                  %v1265 = vld [vmem:[%s1241 + $0x2c] sm:%s1234]
                  %1266 = vst [vmem:[%s1242 + $0x2c] sm:%s1234] %v1265
                  %v1267 = vld [vmem:[%s1241 + $0x30] sm:%s1234]
                  %1268 = vst [vmem:[%s1242 + $0x30] sm:%s1234] %v1267
                  %v1269 = vld [vmem:[%s1241 + $0x34] sm:%s1234]
                  %1270 = vst [vmem:[%s1242 + $0x34] sm:%s1234] %v1269
                  %v1271 = vld [vmem:[%s1241 + $0x38] sm:%s1234]
                  %1272 = vst [vmem:[%s1242 + $0x38] sm:%s1234] %v1271
                  %v1273 = vld [vmem:[%s1241 + $0x3c] sm:%s1234]
                  %1274 = vst [vmem:[%s1242 + $0x3c] sm:%s1234] %v1273
                  %v1275 = vld [vmem:[%s1241 + $0x40] sm:%s1234]
                  %1276 = vst [vmem:[%s1242 + $0x80] sm:%s1234] %v1275
                  %v1277 = vld [vmem:[%s1241 + $0x44] sm:%s1234]
                  %1278 = vst [vmem:[%s1242 + $0x84] sm:%s1234] %v1277
                  %v1279 = vld [vmem:[%s1241 + $0x48] sm:%s1234]
                  %1280 = vst [vmem:[%s1242 + $0x88] sm:%s1234] %v1279
                  %v1281 = vld [vmem:[%s1241 + $0x4c] sm:%s1234]
                  %1282 = vst [vmem:[%s1242 + $0x8c] sm:%s1234] %v1281
                  %v1283 = vld [vmem:[%s1241 + $0x50] sm:%s1234]
                  %1284 = vst [vmem:[%s1242 + $0x90] sm:%s1234] %v1283
                  %v1285 = vld [vmem:[%s1241 + $0x54] sm:%s1234]
                  %1286 = vst [vmem:[%s1242 + $0x94] sm:%s1234] %v1285
                  %v1287 = vld [vmem:[%s1241 + $0x58] sm:%s1234]
                  %1288 = vst [vmem:[%s1242 + $0x98] sm:%s1234] %v1287
                  %v1289 = vld [vmem:[%s1241 + $0x5c] sm:%s1234]
                  %1290 = vst [vmem:[%s1242 + $0x9c] sm:%s1234] %v1289
                  %v1291 = vld [vmem:[%s1241 + $0x60] sm:%s1234]
                  %1292 = vst [vmem:[%s1242 + $0xa0] sm:%s1234] %v1291
                  %v1293 = vld [vmem:[%s1241 + $0x64] sm:%s1234]
                  %1294 = vst [vmem:[%s1242 + $0xa4] sm:%s1234] %v1293
                  %v1295 = vld [vmem:[%s1241 + $0x68] sm:%s1234]
                  %1296 = vst [vmem:[%s1242 + $0xa8] sm:%s1234] %v1295
                  %v1297 = vld [vmem:[%s1241 + $0x6c] sm:%s1234]
                  %1298 = vst [vmem:[%s1242 + $0xac] sm:%s1234] %v1297
                  %v1299 = vld [vmem:[%s1241 + $0x70] sm:%s1234]
                  %1300 = vst [vmem:[%s1242 + $0xb0] sm:%s1234] %v1299
                  %v1301 = vld [vmem:[%s1241 + $0x74] sm:%s1234]
                  %1302 = vst [vmem:[%s1242 + $0xb4] sm:%s1234] %v1301
                  %v1303 = vld [vmem:[%s1241 + $0x78] sm:%s1234]
                  %1304 = vst [vmem:[%s1242 + $0xb8] sm:%s1234] %v1303
                  %v1305 = vld [vmem:[%s1241 + $0x7c] sm:%s1234]
                  %1306 = vst [vmem:[%s1242 + $0xbc] sm:%s1234] %v1305
                $region75: #{tpu_custom_call.1} parent=62 // loop_footer
                  %s1240 = sadd.s32 1, %s1236
                $region76: #{tpu_custom_call.1} parent=62 // loop_footer_branch
                  %1235 = sbr.rel target = $region72
                $region77: #{tpu_custom_call.1} parent=62 // loop_exit
                  _
              $region63: #{tpu_custom_call.1} parent=47 // pred_fallthru
                _
            $region48: #{tpu_custom_call.1} parent=43 // pred_fallthru
              _
            // Predicated region
            $region49: #{tpu_custom_call.1} parent=43 // pred_check
              _
            $region50: #{tpu_custom_call.1} parent=43 // pred_check_branch
              %1148 = sbr.rel (0) target = $region52
            $region51: #{tpu_custom_call.1} parent=43 // pred_region
              %s1150 = ssub.s32 16, 1
              loop: start=0, step=1, limit=1
              $region53: #{tpu_custom_call.1} parent=51 // loop_pre_header
                _
              $region54: #{tpu_custom_call.1} parent=51 // loop_header
                %s1152 = sphi 0, %s1156
                %p1153 = scmp.ge.s32.totalorder %s1152, 1
                %s1157 = sphi %s1127, %s1127
                %s1158 = sphi %s1142, %s1142
              $region55: #{tpu_custom_call.1} parent=51 // loop_header_branch
                %1155 = sbr.rel (%p1153) target = $region59
              $region56: #{tpu_custom_call.1} parent=51 // loop_body
                %v1159 = vld [vmem:[%s1157] sm:%s1150]
                %1160 = vst [vmem:[%s1158] sm:%s1150] %v1159
                %v1161 = vld [vmem:[%s1157 + $0x4] sm:%s1150]
                %1162 = vst [vmem:[%s1158 + $0x4] sm:%s1150] %v1161
                %v1163 = vld [vmem:[%s1157 + $0x8] sm:%s1150]
                %1164 = vst [vmem:[%s1158 + $0x8] sm:%s1150] %v1163
                %v1165 = vld [vmem:[%s1157 + $0xc] sm:%s1150]
                %1166 = vst [vmem:[%s1158 + $0xc] sm:%s1150] %v1165
                %v1167 = vld [vmem:[%s1157 + $0x10] sm:%s1150]
                %1168 = vst [vmem:[%s1158 + $0x10] sm:%s1150] %v1167
                %v1169 = vld [vmem:[%s1157 + $0x14] sm:%s1150]
                %1170 = vst [vmem:[%s1158 + $0x14] sm:%s1150] %v1169
                %v1171 = vld [vmem:[%s1157 + $0x18] sm:%s1150]
                %1172 = vst [vmem:[%s1158 + $0x18] sm:%s1150] %v1171
                %v1173 = vld [vmem:[%s1157 + $0x1c] sm:%s1150]
                %1174 = vst [vmem:[%s1158 + $0x1c] sm:%s1150] %v1173
                %v1175 = vld [vmem:[%s1157 + $0x20] sm:%s1150]
                %1176 = vst [vmem:[%s1158 + $0x20] sm:%s1150] %v1175
                %v1177 = vld [vmem:[%s1157 + $0x24] sm:%s1150]
                %1178 = vst [vmem:[%s1158 + $0x24] sm:%s1150] %v1177
                %v1179 = vld [vmem:[%s1157 + $0x28] sm:%s1150]
                %1180 = vst [vmem:[%s1158 + $0x28] sm:%s1150] %v1179
                %v1181 = vld [vmem:[%s1157 + $0x2c] sm:%s1150]
                %1182 = vst [vmem:[%s1158 + $0x2c] sm:%s1150] %v1181
                %v1183 = vld [vmem:[%s1157 + $0x30] sm:%s1150]
                %1184 = vst [vmem:[%s1158 + $0x30] sm:%s1150] %v1183
                %v1185 = vld [vmem:[%s1157 + $0x34] sm:%s1150]
                %1186 = vst [vmem:[%s1158 + $0x34] sm:%s1150] %v1185
                %v1187 = vld [vmem:[%s1157 + $0x38] sm:%s1150]
                %1188 = vst [vmem:[%s1158 + $0x38] sm:%s1150] %v1187
                %v1189 = vld [vmem:[%s1157 + $0x3c] sm:%s1150]
                %1190 = vst [vmem:[%s1158 + $0x3c] sm:%s1150] %v1189
                %v1191 = vld [vmem:[%s1157 + $0x40] sm:%s1150]
                %1192 = vst [vmem:[%s1158 + $0x80] sm:%s1150] %v1191
                %v1193 = vld [vmem:[%s1157 + $0x44] sm:%s1150]
                %1194 = vst [vmem:[%s1158 + $0x84] sm:%s1150] %v1193
                %v1195 = vld [vmem:[%s1157 + $0x48] sm:%s1150]
                %1196 = vst [vmem:[%s1158 + $0x88] sm:%s1150] %v1195
                %v1197 = vld [vmem:[%s1157 + $0x4c] sm:%s1150]
                %1198 = vst [vmem:[%s1158 + $0x8c] sm:%s1150] %v1197
                %v1199 = vld [vmem:[%s1157 + $0x50] sm:%s1150]
                %1200 = vst [vmem:[%s1158 + $0x90] sm:%s1150] %v1199
                %v1201 = vld [vmem:[%s1157 + $0x54] sm:%s1150]
                %1202 = vst [vmem:[%s1158 + $0x94] sm:%s1150] %v1201
                %v1203 = vld [vmem:[%s1157 + $0x58] sm:%s1150]
                %1204 = vst [vmem:[%s1158 + $0x98] sm:%s1150] %v1203
                %v1205 = vld [vmem:[%s1157 + $0x5c] sm:%s1150]
                %1206 = vst [vmem:[%s1158 + $0x9c] sm:%s1150] %v1205
                %v1207 = vld [vmem:[%s1157 + $0x60] sm:%s1150]
                %1208 = vst [vmem:[%s1158 + $0xa0] sm:%s1150] %v1207
                %v1209 = vld [vmem:[%s1157 + $0x64] sm:%s1150]
                %1210 = vst [vmem:[%s1158 + $0xa4] sm:%s1150] %v1209
                %v1211 = vld [vmem:[%s1157 + $0x68] sm:%s1150]
                %1212 = vst [vmem:[%s1158 + $0xa8] sm:%s1150] %v1211
                %v1213 = vld [vmem:[%s1157 + $0x6c] sm:%s1150]
                %1214 = vst [vmem:[%s1158 + $0xac] sm:%s1150] %v1213
                %v1215 = vld [vmem:[%s1157 + $0x70] sm:%s1150]
                %1216 = vst [vmem:[%s1158 + $0xb0] sm:%s1150] %v1215
                %v1217 = vld [vmem:[%s1157 + $0x74] sm:%s1150]
                %1218 = vst [vmem:[%s1158 + $0xb4] sm:%s1150] %v1217
                %v1219 = vld [vmem:[%s1157 + $0x78] sm:%s1150]
                %1220 = vst [vmem:[%s1158 + $0xb8] sm:%s1150] %v1219
                %v1221 = vld [vmem:[%s1157 + $0x7c] sm:%s1150]
                %1222 = vst [vmem:[%s1158 + $0xbc] sm:%s1150] %v1221
              $region57: #{tpu_custom_call.1} parent=51 // loop_footer
                %s1156 = sadd.s32 1, %s1152
              $region58: #{tpu_custom_call.1} parent=51 // loop_footer_branch
                %1151 = sbr.rel target = $region54
              $region59: #{tpu_custom_call.1} parent=51 // loop_exit
                _
            $region52: #{tpu_custom_call.1} parent=43 // pred_fallthru
              _
          $region44: #{tpu_custom_call.1} parent=39 // pred_fallthru
            _
          %1307 = vnop
        $region40: #{tpu_custom_call.1} parent=35 // pred_fallthru
          _
        // Predicated region
        $region78: #{tpu_custom_call.1} parent=35 // pred_check
          %p1308 = pneg %p154
        $region79: #{tpu_custom_call.1} parent=35 // pred_check_branch
          %1310 = sbr.rel (%p1308) target = $region81
        $region80: #{tpu_custom_call.1} parent=35 // pred_region
          %s1312 = ssub.s32 32, 32
          %1313 = vsyncadd %s1129, %s1312
          %s1314 = smul.addr %s21, 16
          %s1315 = scalar_lea.hbm %s5, %s1314
          %s1316 = sshll.u32 %s1132, 4
          %s1317 = int_to_ptr.vmem [resolvable:$true] %s1316
          %1322 = dma.vmem_to_hbm [thread:$0]  %s1317, 32, %s1315, %s1129, 16, 32, 1
        $region81: #{tpu_custom_call.1} parent=35 // pred_fallthru
          _
        // Predicated region
        $region82: #{tpu_custom_call.1} parent=35 // pred_check
          %p1323 = pneg %p180
        $region83: #{tpu_custom_call.1} parent=35 // pred_check_branch
          %1325 = sbr.rel (%p1323) target = $region85
        $region84: #{tpu_custom_call.1} parent=35 // pred_region
          %s1326 = smul.u32 16, %s21
          %s1327 = smul.addr %s1326, 8
          %s1328 = scalar_lea.vmem %s6, %s1327
          // Predicated region
          $region86: #{tpu_custom_call.1} parent=84 // pred_check
            _
          $region87: #{tpu_custom_call.1} parent=84 // pred_check_branch
            %1330 = sbr.rel (0) target = $region89
          $region88: #{tpu_custom_call.1} parent=84 // pred_region
            // Predicated region
            $region90: #{tpu_custom_call.1} parent=88 // pred_check
              _
            $region91: #{tpu_custom_call.1} parent=88 // pred_check_branch
              %1332 = sbr.rel (0) target = $region93
            $region92: #{tpu_custom_call.1} parent=88 // pred_region
              // Predicated region
              $region105: #{tpu_custom_call.1} parent=92 // pred_check
                _
              $region106: #{tpu_custom_call.1} parent=92 // pred_check_branch
                %1410 = sbr.rel (0) target = $region108
              $region107: #{tpu_custom_call.1} parent=92 // pred_region
                loop: start=0, step=1, limit=1
                $region109: #{tpu_custom_call.1} parent=107 // loop_pre_header
                  _
                $region110: #{tpu_custom_call.1} parent=107 // loop_header
                  %s1412 = sphi 0, %s1416
                  %p1413 = scmp.ge.s32.totalorder %s1412, 1
                  %s1417 = sphi %s1136, %s1136
                  %s1418 = sphi %s1328, %s1328
                $region111: #{tpu_custom_call.1} parent=107 // loop_header_branch
                  %1415 = sbr.rel (%p1413) target = $region115
                $region112: #{tpu_custom_call.1} parent=107 // loop_body
                  %v1419 = vld [vmem:[%s1417] sm:$0xff]
                  %1420 = vst [vmem:[%s1418] sm:$0xff] %v1419
                  %v1421 = vld [vmem:[%s1417 + $0x8] sm:$0xff]
                  %1422 = vst [vmem:[%s1418 + $0x8] sm:$0xff] %v1421
                  %v1423 = vld [vmem:[%s1417 + $0x10] sm:$0xff]
                  %1424 = vst [vmem:[%s1418 + $0x10] sm:$0xff] %v1423
                  %v1425 = vld [vmem:[%s1417 + $0x18] sm:$0xff]
                  %1426 = vst [vmem:[%s1418 + $0x18] sm:$0xff] %v1425
                  %v1427 = vld [vmem:[%s1417 + $0x20] sm:$0xff]
                  %1428 = vst [vmem:[%s1418 + $0x20] sm:$0xff] %v1427
                  %v1429 = vld [vmem:[%s1417 + $0x28] sm:$0xff]
                  %1430 = vst [vmem:[%s1418 + $0x28] sm:$0xff] %v1429
                  %v1431 = vld [vmem:[%s1417 + $0x30] sm:$0xff]
                  %1432 = vst [vmem:[%s1418 + $0x30] sm:$0xff] %v1431
                  %v1433 = vld [vmem:[%s1417 + $0x38] sm:$0xff]
                  %1434 = vst [vmem:[%s1418 + $0x38] sm:$0xff] %v1433
                  %v1435 = vld [vmem:[%s1417 + $0x40] sm:$0xff]
                  %1436 = vst [vmem:[%s1418 + $0x40] sm:$0xff] %v1435
                  %v1437 = vld [vmem:[%s1417 + $0x48] sm:$0xff]
                  %1438 = vst [vmem:[%s1418 + $0x48] sm:$0xff] %v1437
                  %v1439 = vld [vmem:[%s1417 + $0x50] sm:$0xff]
                  %1440 = vst [vmem:[%s1418 + $0x50] sm:$0xff] %v1439
                  %v1441 = vld [vmem:[%s1417 + $0x58] sm:$0xff]
                  %1442 = vst [vmem:[%s1418 + $0x58] sm:$0xff] %v1441
                  %v1443 = vld [vmem:[%s1417 + $0x60] sm:$0xff]
                  %1444 = vst [vmem:[%s1418 + $0x60] sm:$0xff] %v1443
                  %v1445 = vld [vmem:[%s1417 + $0x68] sm:$0xff]
                  %1446 = vst [vmem:[%s1418 + $0x68] sm:$0xff] %v1445
                  %v1447 = vld [vmem:[%s1417 + $0x70] sm:$0xff]
                  %1448 = vst [vmem:[%s1418 + $0x70] sm:$0xff] %v1447
                  %v1449 = vld [vmem:[%s1417 + $0x78] sm:$0xff]
                  %1450 = vst [vmem:[%s1418 + $0x78] sm:$0xff] %v1449
                  %v1451 = vld [vmem:[%s1417 + $0x80] sm:$0xff]
                  %1452 = vst [vmem:[%s1418 + $0x100] sm:$0xff] %v1451
                  %v1453 = vld [vmem:[%s1417 + $0x88] sm:$0xff]
                  %1454 = vst [vmem:[%s1418 + $0x108] sm:$0xff] %v1453
                  %v1455 = vld [vmem:[%s1417 + $0x90] sm:$0xff]
                  %1456 = vst [vmem:[%s1418 + $0x110] sm:$0xff] %v1455
                  %v1457 = vld [vmem:[%s1417 + $0x98] sm:$0xff]
                  %1458 = vst [vmem:[%s1418 + $0x118] sm:$0xff] %v1457
                  %v1459 = vld [vmem:[%s1417 + $0xa0] sm:$0xff]
                  %1460 = vst [vmem:[%s1418 + $0x120] sm:$0xff] %v1459
                  %v1461 = vld [vmem:[%s1417 + $0xa8] sm:$0xff]
                  %1462 = vst [vmem:[%s1418 + $0x128] sm:$0xff] %v1461
                  %v1463 = vld [vmem:[%s1417 + $0xb0] sm:$0xff]
                  %1464 = vst [vmem:[%s1418 + $0x130] sm:$0xff] %v1463
                  %v1465 = vld [vmem:[%s1417 + $0xb8] sm:$0xff]
                  %1466 = vst [vmem:[%s1418 + $0x138] sm:$0xff] %v1465
                  %v1467 = vld [vmem:[%s1417 + $0xc0] sm:$0xff]
                  %1468 = vst [vmem:[%s1418 + $0x140] sm:$0xff] %v1467
                  %v1469 = vld [vmem:[%s1417 + $0xc8] sm:$0xff]
                  %1470 = vst [vmem:[%s1418 + $0x148] sm:$0xff] %v1469
                  %v1471 = vld [vmem:[%s1417 + $0xd0] sm:$0xff]
                  %1472 = vst [vmem:[%s1418 + $0x150] sm:$0xff] %v1471
                  %v1473 = vld [vmem:[%s1417 + $0xd8] sm:$0xff]
                  %1474 = vst [vmem:[%s1418 + $0x158] sm:$0xff] %v1473
                  %v1475 = vld [vmem:[%s1417 + $0xe0] sm:$0xff]
                  %1476 = vst [vmem:[%s1418 + $0x160] sm:$0xff] %v1475
                  %v1477 = vld [vmem:[%s1417 + $0xe8] sm:$0xff]
                  %1478 = vst [vmem:[%s1418 + $0x168] sm:$0xff] %v1477
                  %v1479 = vld [vmem:[%s1417 + $0xf0] sm:$0xff]
                  %1480 = vst [vmem:[%s1418 + $0x170] sm:$0xff] %v1479
                  %v1481 = vld [vmem:[%s1417 + $0xf8] sm:$0xff]
                  %1482 = vst [vmem:[%s1418 + $0x178] sm:$0xff] %v1481
                $region113: #{tpu_custom_call.1} parent=107 // loop_footer
                  %s1416 = sadd.s32 1, %s1412
                $region114: #{tpu_custom_call.1} parent=107 // loop_footer_branch
                  %1411 = sbr.rel target = $region110
                $region115: #{tpu_custom_call.1} parent=107 // loop_exit
                  _
              $region108: #{tpu_custom_call.1} parent=92 // pred_fallthru
                _
              // Predicated region
              $region116: #{tpu_custom_call.1} parent=92 // pred_check
                _
              $region117: #{tpu_custom_call.1} parent=92 // pred_check_branch
                %1484 = sbr.rel target = $region119
              $region118: #{tpu_custom_call.1} parent=92 // pred_region
                _
              $region119: #{tpu_custom_call.1} parent=92 // pred_fallthru
                _
            $region93: #{tpu_custom_call.1} parent=88 // pred_fallthru
              _
            // Predicated region
            $region94: #{tpu_custom_call.1} parent=88 // pred_check
              _
            $region95: #{tpu_custom_call.1} parent=88 // pred_check_branch
              %1334 = sbr.rel target = $region97
            $region96: #{tpu_custom_call.1} parent=88 // pred_region
              %s1336 = ssub.s32 256, 1
              loop: start=0, step=1, limit=1
              $region98: #{tpu_custom_call.1} parent=96 // loop_pre_header
                _
              $region99: #{tpu_custom_call.1} parent=96 // loop_header
                %s1338 = sphi 0, %s1342
                %p1339 = scmp.ge.s32.totalorder %s1338, 1
                %s1343 = sphi %s1136, %s1136
                %s1344 = sphi %s1328, %s1328
              $region100: #{tpu_custom_call.1} parent=96 // loop_header_branch
                %1341 = sbr.rel (%p1339) target = $region104
              $region101: #{tpu_custom_call.1} parent=96 // loop_body
                %v1345 = vld [vmem:[%s1343] sm:%s1336]
                %1346 = vst [vmem:[%s1344] sm:%s1336] %v1345
                %v1347 = vld [vmem:[%s1343 + $0x8] sm:%s1336]
                %1348 = vst [vmem:[%s1344 + $0x8] sm:%s1336] %v1347
                %v1349 = vld [vmem:[%s1343 + $0x10] sm:%s1336]
                %1350 = vst [vmem:[%s1344 + $0x10] sm:%s1336] %v1349
                %v1351 = vld [vmem:[%s1343 + $0x18] sm:%s1336]
                %1352 = vst [vmem:[%s1344 + $0x18] sm:%s1336] %v1351
                %v1353 = vld [vmem:[%s1343 + $0x20] sm:%s1336]
                %1354 = vst [vmem:[%s1344 + $0x20] sm:%s1336] %v1353
                %v1355 = vld [vmem:[%s1343 + $0x28] sm:%s1336]
                %1356 = vst [vmem:[%s1344 + $0x28] sm:%s1336] %v1355
                %v1357 = vld [vmem:[%s1343 + $0x30] sm:%s1336]
                %1358 = vst [vmem:[%s1344 + $0x30] sm:%s1336] %v1357
                %v1359 = vld [vmem:[%s1343 + $0x38] sm:%s1336]
                %1360 = vst [vmem:[%s1344 + $0x38] sm:%s1336] %v1359
                %v1361 = vld [vmem:[%s1343 + $0x40] sm:%s1336]
                %1362 = vst [vmem:[%s1344 + $0x40] sm:%s1336] %v1361
                %v1363 = vld [vmem:[%s1343 + $0x48] sm:%s1336]
                %1364 = vst [vmem:[%s1344 + $0x48] sm:%s1336] %v1363
                %v1365 = vld [vmem:[%s1343 + $0x50] sm:%s1336]
                %1366 = vst [vmem:[%s1344 + $0x50] sm:%s1336] %v1365
                %v1367 = vld [vmem:[%s1343 + $0x58] sm:%s1336]
                %1368 = vst [vmem:[%s1344 + $0x58] sm:%s1336] %v1367
                %v1369 = vld [vmem:[%s1343 + $0x60] sm:%s1336]
                %1370 = vst [vmem:[%s1344 + $0x60] sm:%s1336] %v1369
                %v1371 = vld [vmem:[%s1343 + $0x68] sm:%s1336]
                %1372 = vst [vmem:[%s1344 + $0x68] sm:%s1336] %v1371
                %v1373 = vld [vmem:[%s1343 + $0x70] sm:%s1336]
                %1374 = vst [vmem:[%s1344 + $0x70] sm:%s1336] %v1373
                %v1375 = vld [vmem:[%s1343 + $0x78] sm:%s1336]
                %1376 = vst [vmem:[%s1344 + $0x78] sm:%s1336] %v1375
                %v1377 = vld [vmem:[%s1343 + $0x80] sm:%s1336]
                %1378 = vst [vmem:[%s1344 + $0x100] sm:%s1336] %v1377
                %v1379 = vld [vmem:[%s1343 + $0x88] sm:%s1336]
                %1380 = vst [vmem:[%s1344 + $0x108] sm:%s1336] %v1379
                %v1381 = vld [vmem:[%s1343 + $0x90] sm:%s1336]
                %1382 = vst [vmem:[%s1344 + $0x110] sm:%s1336] %v1381
                %v1383 = vld [vmem:[%s1343 + $0x98] sm:%s1336]
                %1384 = vst [vmem:[%s1344 + $0x118] sm:%s1336] %v1383
                %v1385 = vld [vmem:[%s1343 + $0xa0] sm:%s1336]
                %1386 = vst [vmem:[%s1344 + $0x120] sm:%s1336] %v1385
                %v1387 = vld [vmem:[%s1343 + $0xa8] sm:%s1336]
                %1388 = vst [vmem:[%s1344 + $0x128] sm:%s1336] %v1387
                %v1389 = vld [vmem:[%s1343 + $0xb0] sm:%s1336]
                %1390 = vst [vmem:[%s1344 + $0x130] sm:%s1336] %v1389
                %v1391 = vld [vmem:[%s1343 + $0xb8] sm:%s1336]
                %1392 = vst [vmem:[%s1344 + $0x138] sm:%s1336] %v1391
                %v1393 = vld [vmem:[%s1343 + $0xc0] sm:%s1336]
                %1394 = vst [vmem:[%s1344 + $0x140] sm:%s1336] %v1393
                %v1395 = vld [vmem:[%s1343 + $0xc8] sm:%s1336]
                %1396 = vst [vmem:[%s1344 + $0x148] sm:%s1336] %v1395
                %v1397 = vld [vmem:[%s1343 + $0xd0] sm:%s1336]
                %1398 = vst [vmem:[%s1344 + $0x150] sm:%s1336] %v1397
                %v1399 = vld [vmem:[%s1343 + $0xd8] sm:%s1336]
                %1400 = vst [vmem:[%s1344 + $0x158] sm:%s1336] %v1399
                %v1401 = vld [vmem:[%s1343 + $0xe0] sm:%s1336]
                %1402 = vst [vmem:[%s1344 + $0x160] sm:%s1336] %v1401
                %v1403 = vld [vmem:[%s1343 + $0xe8] sm:%s1336]
                %1404 = vst [vmem:[%s1344 + $0x168] sm:%s1336] %v1403
                %v1405 = vld [vmem:[%s1343 + $0xf0] sm:%s1336]
                %1406 = vst [vmem:[%s1344 + $0x170] sm:%s1336] %v1405
                %v1407 = vld [vmem:[%s1343 + $0xf8] sm:%s1336]
                %1408 = vst [vmem:[%s1344 + $0x178] sm:%s1336] %v1407
              $region102: #{tpu_custom_call.1} parent=96 // loop_footer
                %s1342 = sadd.s32 1, %s1338
              $region103: #{tpu_custom_call.1} parent=96 // loop_footer_branch
                %1337 = sbr.rel target = $region99
              $region104: #{tpu_custom_call.1} parent=96 // loop_exit
                _
            $region97: #{tpu_custom_call.1} parent=88 // pred_fallthru
              _
          $region89: #{tpu_custom_call.1} parent=84 // pred_fallthru
            _
          %1485 = vnop
        $region85: #{tpu_custom_call.1} parent=35 // pred_fallthru
          _
      $region36: #{tpu_custom_call.1} parent=5 // pred_fallthru
        _
      %p1486 = scmp.le.s32.totalorder 2, %s16
      // Predicated region
      $region120: #{tpu_custom_call.1} parent=5 // pred_check
        %p1487 = pneg %p1486
      $region121: #{tpu_custom_call.1} parent=5 // pred_check_branch
        %1489 = sbr.rel (%p1487) target = $region123
      $region122: #{tpu_custom_call.1} parent=5 // pred_region
        %s1490 = ssub.s32 %s16, 2
        // Predicated region
        $region124: #{tpu_custom_call.1} parent=122 // pred_check
          %p1491 = pneg %p134
        $region125: #{tpu_custom_call.1} parent=122 // pred_check_branch
          %1493 = sbr.rel (%p1491) target = $region127
        $region126: #{tpu_custom_call.1} parent=122 // pred_region
          %s1494 = sand.u32 %s119, 1
          %s1495 = sand.u32 %s119, 1
          %s1496 = smul.addr %s1495, 128
          %s1497 = scalar_lea.vmem [#allocation2], %s1496
        $region127: #{tpu_custom_call.1} parent=122 // pred_fallthru
          _
        // Predicated region
        $region128: #{tpu_custom_call.1} parent=122 // pred_check
          %p1498 = pneg %p160
        $region129: #{tpu_custom_call.1} parent=122 // pred_check_branch
          %1500 = sbr.rel (%p1498) target = $region131
        $region130: #{tpu_custom_call.1} parent=122 // pred_region
          %s1501 = sand.u32 %s145, 1
          %s1502 = scalar_lea.sflag [#allocation4], %s1501
          %s1503 = sand.u32 %s145, 1
          %s1504 = smul.addr %s1503, 2
          %s1505 = scalar_lea.vmem [#allocation3], %s1504
          %1506 = dma.done %s1502, 32
        $region131: #{tpu_custom_call.1} parent=122 // pred_fallthru
          _
        // Predicated region
        $region132: #{tpu_custom_call.1} parent=122 // pred_check
          %p1507 = pneg %p186
        $region133: #{tpu_custom_call.1} parent=122 // pred_check_branch
          %1509 = sbr.rel (%p1507) target = $region135
        $region134: #{tpu_custom_call.1} parent=122 // pred_region
          %s1510 = sand.u32 %s171, 1
          %s1511 = sand.u32 %s171, 1
          %s1512 = smul.addr %s1511, 256
          %s1513 = scalar_lea.vmem [#allocation5], %s1512
        $region135: #{tpu_custom_call.1} parent=122 // pred_fallthru
          _
      $region123: #{tpu_custom_call.1} parent=5 // pred_fallthru
        _
    $region6: #{tpu_custom_call.1} parent=1 // loop_footer
      %s20 = sadd.s32 1, %s16
    $region7: #{tpu_custom_call.1} parent=1 // loop_footer_branch
      %15 = sbr.rel target = $region3
    $region8: #{tpu_custom_call.1} parent=1 // loop_exit
      _
    %1514 = vsyncpa [#allocation4], 1
    %s1515 = scalar_lea.sflag [#allocation4], 1
    %1516 = vsyncpa %s1515, 1

</llo_original>
